<compile_context>
chip_gen: v6e
topology: v6e:2x2x1
jax: 0.10.0
libtpu: 0.0.40
codegen_flags: <defaults>
</compile_context>

<pallas_src>
import functools

import jax
import jax.numpy as jnp
from jax.experimental import pallas as pl
from jax.experimental.pallas import tpu as pltpu


def _round_up(x, m):
    return (x + m - 1) // m * m


def conv_pool_kernel(xs_ref, w_ref, b_ref, z_ref, s1_ref, s2_ref, *,
                     H, Wp, Whpad, Cpad, C8):
    """Per image: 3x3 conv (+bias) -> LeakyReLU(0.01) -> 2x2 avg-pool, plus per-image
    channel sum / sum-of-squares for the batch-norm statistics.

    xs_ref:        (1, (H+2)*Whpad, 4*Cin) bf16  tap-stacked stream: per virtual output
                                                 column, the 4 consecutive padded input
                                                 columns it needs (channels minor)
    w_ref:         (3, 4*Cin, 2*Cpad) bf16       per-vertical-tap weight; output columns
                                                 [0:Cpad]=even cols, [Cpad:2*Cpad]=odd cols
    b_ref:         (1, 2*Cpad) f32               bias duplicated for both halves
    z_ref:         (1, H//2, Wp, C8) f32         pooled LeakyReLU(conv) output
    s1_ref/s2_ref: (1, 1, Cpad) f32              per-image sum / sum of squares of z
    """
    L = H * Whpad
    Hp = H // 2
    xs = xs_ref[0]                                       # (Fe, 4*Cin) bf16

    # 3 fat MXU matmuls (one per vertical tap) instead of 18 thin K=Cin ones.
    acc = jnp.dot(xs[0:L, :], w_ref[0], preferred_element_type=jnp.float32)
    acc = acc + jnp.dot(xs[Whpad:Whpad + L, :], w_ref[1],
                        preferred_element_type=jnp.float32)
    acc = acc + jnp.dot(xs[2 * Whpad:2 * Whpad + L, :], w_ref[2],
                        preferred_element_type=jnp.float32)

    y = acc + b_ref[...]                                 # (L, 2*Cpad) f32
    y = jnp.where(y >= 0, y, 0.01 * y)                   # LeakyReLU, slope 0.01
    cs = y[:, :Cpad] + y[:, Cpad:]                       # horizontal 2-sum of pool windows
                                                         # (vreg-aligned lane slices)

    # Vertical 2-sum + running BN partial sums (no store->reload of the pooled tile).
    s1 = jnp.zeros((1, Cpad), jnp.float32)
    s2 = jnp.zeros((1, Cpad), jnp.float32)
    for i2 in range(Hp):
        top = cs[(2 * i2) * Whpad:(2 * i2) * Whpad + Wp, :]        # aligned (Whpad % 8 == 0)
        bot = cs[(2 * i2 + 1) * Whpad:(2 * i2 + 1) * Whpad + Wp, :]
        row = 0.25 * (top + bot)                                   # (Wp, Cpad)
        s1 = s1 + jnp.sum(row, axis=0, keepdims=True)
        s2 = s2 + jnp.sum(row * row, axis=0, keepdims=True)
        z_ref[0, i2] = row[:, :C8]                                 # slim C8-channel store
    s1_ref[0] = s1
    s2_ref[0] = s2


def bn_apply_kernel(z_ref, scale_ref, shift_ref, o_ref):
    # Per-image affine: out = z * scale + shift (scale/shift fold mean/var/gamma/beta).
    o_ref[0] = z_ref[0] * scale_ref[0] + shift_ref[0]


def conv_block_forward(x_nchw, conv_w, conv_b, bn_gamma, bn_beta, *, eps=1e-5):
    N, Cin, H, W = x_nchw.shape
    Cout = conv_w.shape[0]
    # TODO(synk): odd spatial sizes (AvgPool2d floor behaviour) are not handled.
    assert H % 2 == 0 and W % 2 == 0, "even H, W required"
    Hp, Wp = H // 2, W // 2
    Whpad = _round_up(Wp, 8)                 # sublane-aligned virtual column grid
    Hpad = H + 2
    Fe = Hpad * Whpad
    L = H * Whpad
    K = 4 * Cin
    Cpad = _round_up(Cout, 128)              # lane-dense matmul output
    C8 = _round_up(Cout, 8)                  # slim intermediate channel axis
    cnt = N * Hp * Wp

    # ---- XLA glue: cast early to bf16, pad once, stack the 4 consecutive padded columns
    # each virtual output column needs (last dim 4*Cin, one merged stream per image) ----
    xb = jnp.transpose(x_nchw, (0, 2, 3, 1)).astype(jnp.bfloat16)      # NHWC bf16
    wpad_r = 2 * Whpad - W + 1
    xp = jnp.pad(xb, ((0, 0), (1, 1), (1, wpad_r), (0, 0)))            # (N, H+2, 2*Whpad+2, Cin)
    xs = jnp.stack([xp[:, :, t::2, :][:, :, :Whpad, :] for t in range(4)], axis=3)
    xs = xs.reshape(N, Fe, K)                                          # (N, Fe, 4*Cin) bf16

    # (Cout,Cin,3,3) -> per-dh (4*Cin, 2*Cpad).  Even outputs use tap blocks t=0..2
    # (kw=t), odd outputs use t=1..3 (kw=t-1); the unused tap block of each half is zero.
    wk = jnp.transpose(conv_w, (2, 3, 1, 0))                           # (kh, kw, Cin, Cout)
    zblk = jnp.zeros((3, 1, Cin, Cout), conv_w.dtype)
    w_even = jnp.concatenate([wk, zblk], axis=1)                       # (3, 4, Cin, Cout)
    w_odd = jnp.concatenate([zblk, wk], axis=1)                        # (3, 4, Cin, Cout)
    pad_c = ((0, 0), (0, 0), (0, 0), (0, Cpad - Cout))
    w_cat = jnp.concatenate([jnp.pad(w_even, pad_c), jnp.pad(w_odd, pad_c)], axis=-1)
    w_cat = w_cat.reshape(3, K, 2 * Cpad).astype(jnp.bfloat16)
    b2 = jnp.tile(jnp.pad(conv_b, (0, Cpad - Cout)), 2)
    b2 = b2.reshape(1, 2 * Cpad).astype(jnp.float32)

    kernel1 = functools.partial(conv_pool_kernel, H=H, Wp=Wp, Whpad=Whpad,
                                Cpad=Cpad, C8=C8)
    cost = pl.CostEstimate(
        flops=2 * N * 3 * L * K * 2 * Cpad,
        transcendentals=0,
        bytes_accessed=(N * Fe * K * 2 + 3 * K * 2 * Cpad * 2 + 2 * Cpad * 4
                        + N * Hp * Wp * C8 * 4 + 2 * N * Cpad * 4),
    )
    pooled, s1, s2 = pl.pallas_call(
        kernel1,
        out_shape=(jax.ShapeDtypeStruct((N, Hp, Wp, C8), jnp.float32),
                   jax.ShapeDtypeStruct((N, 1, Cpad), jnp.float32),
                   jax.ShapeDtypeStruct((N, 1, Cpad), jnp.float32)),
        grid=(N,),
        in_specs=[pl.BlockSpec((1, Fe, K), lambda n: (n, 0, 0)),
                  pl.BlockSpec((3, K, 2 * Cpad), lambda n: (0, 0, 0)),
                  pl.BlockSpec((1, 2 * Cpad), lambda n: (0, 0))],
        out_specs=(pl.BlockSpec((1, Hp, Wp, C8), lambda n: (n, 0, 0, 0)),
                   pl.BlockSpec((1, 1, Cpad), lambda n: (n, 0, 0)),
                   pl.BlockSpec((1, 1, Cpad), lambda n: (n, 0, 0))),
        compiler_params=pltpu.CompilerParams(
            dimension_semantics=("parallel",),
            vmem_limit_bytes=32 * 1024 * 1024),
        cost_estimate=cost,
    )(xs, w_cat, b2)

    # ---- tiny (Cout,) BN finalize in XLA, folded into a single scale/shift ----
    s1t = jnp.sum(s1, axis=0).reshape(Cpad)[:Cout]
    s2t = jnp.sum(s2, axis=0).reshape(Cpad)[:Cout]
    mean = s1t / cnt
    var = s2t / cnt - mean * mean                       # biased (training-mode) variance
    scale = bn_gamma.astype(jnp.float32) * jax.lax.rsqrt(var + eps)
    shift = bn_beta.astype(jnp.float32) - mean * scale
    scale = jnp.pad(scale, (0, C8 - Cout)).reshape(1, 1, C8)
    shift = jnp.pad(shift, (0, C8 - Cout)).reshape(1, 1, C8)

    out_nhwc = pl.pallas_call(
        bn_apply_kernel,
        out_shape=jax.ShapeDtypeStruct((N, Hp, Wp, C8), jnp.float32),
        grid=(N,),
        in_specs=[pl.BlockSpec((1, Hp, Wp, C8), lambda n: (n, 0, 0, 0)),
                  pl.BlockSpec((1, 1, C8), lambda n: (0, 0, 0)),
                  pl.BlockSpec((1, 1, C8), lambda n: (0, 0, 0))],
        out_specs=pl.BlockSpec((1, Hp, Wp, C8), lambda n: (n, 0, 0, 0)),
        compiler_params=pltpu.CompilerParams(
            dimension_semantics=("parallel",),
            vmem_limit_bytes=32 * 1024 * 1024),
    )(pooled, scale, shift)

    # TODO(synk): the final NCHW relayout could be fused into bn_apply via an in-kernel
    # transpose; it now only touches the un-padded (N, Cout, Hp, Wp) output bytes.
    return jnp.transpose(out_nhwc[..., :Cout], (0, 3, 1, 2))


if __name__ == "__main__":
    key = jax.random.PRNGKey(0)
    k1, k2, k3, k4, k5 = jax.random.split(key, 5)
    N, Cin, Cout, H, W = 2, 4, 8, 16, 16

    x = jax.random.normal(k1, (N, Cin, H, W), dtype=jnp.float32)
    conv_w = 0.1 * jax.random.normal(k2, (Cout, Cin, 3, 3), dtype=jnp.float32)
    conv_b = 0.1 * jax.random.normal(k3, (Cout,), dtype=jnp.float32)
    gamma = jnp.ones((Cout,), jnp.float32) + 0.1 * jax.random.normal(k4, (Cout,), dtype=jnp.float32)
    beta = 0.1 * jax.random.normal(k5, (Cout,), dtype=jnp.float32)

    out = conv_block_forward(x, conv_w, conv_b, gamma, beta)
    out = jax.block_until_ready(out)

    # Pure-JAX reference matching PyTorch training-mode forward.  The kernel feeds the MXU
    # bf16 inputs (f32 accumulation), so the tight check uses the same bf16-quantized conv
    # inputs; a looser check confirms agreement with the full-f32 module.
    def reference(xr, wr):
        y = jax.lax.conv_general_dilated(
            xr, wr, window_strides=(1, 1), padding="SAME",
            dimension_numbers=("NCHW", "OIHW", "NCHW")) + conv_b[None, :, None, None]
        y = jnp.where(y >= 0, y, 0.01 * y)
        z = y.reshape(N, Cout, H // 2, 2, W // 2, 2).mean(axis=(3, 5))
        mu = z.mean(axis=(0, 2, 3), keepdims=True)
        var = ((z - mu) ** 2).mean(axis=(0, 2, 3), keepdims=True)
        return (z - mu) * jax.lax.rsqrt(var + 1e-5) * gamma[None, :, None, None] \
            + beta[None, :, None, None]

    ref_bf16 = reference(x.astype(jnp.bfloat16).astype(jnp.float32),
                         conv_w.astype(jnp.bfloat16).astype(jnp.float32))
    ref_f32 = reference(x, conv_w)

    assert out.shape == (N, Cout, H // 2, W // 2)
    assert jnp.allclose(out, ref_bf16, atol=1e-3, rtol=1e-3), \
        float(jnp.max(jnp.abs(out - ref_bf16)))
    assert jnp.allclose(out, ref_f32, atol=5e-2, rtol=5e-2), \
        float(jnp.max(jnp.abs(out - ref_f32)))
    print("KERNEL_OK")
</pallas_src>

<mosaic_0001>
module attributes {stable_mosaic.version = 11 : i64} {
  func.func @conv_pool_kernel(%arg0: i32, %arg1: memref<1x144x16xbf16, #tpu.memory_space<vmem>>, %arg2: memref<3x16x256xbf16, #tpu.memory_space<vmem>>, %arg3: memref<1x256xf32, #tpu.memory_space<vmem>>, %arg4: memref<1x8x8x8xf32, #tpu.memory_space<vmem>>, %arg5: memref<1x1x128xf32, #tpu.memory_space<vmem>>, %arg6: memref<1x1x128xf32, #tpu.memory_space<vmem>>) attributes {dimension_semantics = [#tpu.dimension_semantics<parallel>], iteration_bounds = array<i64: 2>, scalar_prefetch = 0 : i64, scratch_operands = 0 : i64, tpu.core_type = #tpu.core_type<tc>, window_params = [{transform_indices = @transform_0, window_bounds = array<i64: 1, 144, 16>}, {pipeline_mode = #tpu.pipeline_mode<synchronous>, transform_indices = @transform_1, window_bounds = array<i64: 3, 16, 256>}, {pipeline_mode = #tpu.pipeline_mode<synchronous>, transform_indices = @transform_2, window_bounds = array<i64: 1, 256>}, {transform_indices = @transform_3, window_bounds = array<i64: 1, 8, 8, 8>}, {transform_indices = @transform_4, window_bounds = array<i64: 1, 1, 128>}, {transform_indices = @transform_5, window_bounds = array<i64: 1, 1, 128>}]} {
    %c0 = arith.constant 0 : index
    %c0_0 = arith.constant 0 : index
    %c0_1 = arith.constant 0 : index
    %0 = vector.load %arg1[%c0, %c0_0, %c0_1] : memref<1x144x16xbf16, #tpu.memory_space<vmem>>, vector<1x144x16xbf16>
    %1 = vector.shape_cast %0 : vector<1x144x16xbf16> to vector<144x16xbf16>
    %2 = vector.extract_strided_slice %1 {offsets = [0, 0], sizes = [128, 16], strides = [1, 1]} : vector<144x16xbf16> to vector<128x16xbf16>
    %c0_2 = arith.constant 0 : index
    %c0_3 = arith.constant 0 : index
    %c0_4 = arith.constant 0 : index
    %3 = vector.load %arg2[%c0_2, %c0_3, %c0_4] : memref<3x16x256xbf16, #tpu.memory_space<vmem>>, vector<1x16x256xbf16>
    %4 = vector.shape_cast %3 : vector<1x16x256xbf16> to vector<16x256xbf16>
    %cst = arith.constant dense<0.000000e+00> : vector<128x256xf32>
    %5 = tpu.matmul %2, %4, %cst {dimension_numbers = #tpu.dot_dimension_numbers<[1], [0], [0], [1], [0, 0, 1, 1], [], []>} : vector<128x16xbf16>, vector<16x256xbf16>, vector<128x256xf32> -> vector<128x256xf32>
    %6 = vector.extract_strided_slice %1 {offsets = [8, 0], sizes = [128, 16], strides = [1, 1]} : vector<144x16xbf16> to vector<128x16xbf16>
    %c1 = arith.constant 1 : index
    %c0_5 = arith.constant 0 : index
    %c0_6 = arith.constant 0 : index
    %7 = vector.load %arg2[%c1, %c0_5, %c0_6] : memref<3x16x256xbf16, #tpu.memory_space<vmem>>, vector<1x16x256xbf16>
    %8 = vector.shape_cast %7 : vector<1x16x256xbf16> to vector<16x256xbf16>
    %cst_7 = arith.constant dense<0.000000e+00> : vector<128x256xf32>
    %9 = tpu.matmul %6, %8, %cst_7 {dimension_numbers = #tpu.dot_dimension_numbers<[1], [0], [0], [1], [0, 0, 1, 1], [], []>} : vector<128x16xbf16>, vector<16x256xbf16>, vector<128x256xf32> -> vector<128x256xf32>
    %10 = arith.addf %5, %9 : vector<128x256xf32>
    %11 = vector.extract_strided_slice %1 {offsets = [16, 0], sizes = [128, 16], strides = [1, 1]} : vector<144x16xbf16> to vector<128x16xbf16>
    %c2 = arith.constant 2 : index
    %c0_8 = arith.constant 0 : index
    %c0_9 = arith.constant 0 : index
    %12 = vector.load %arg2[%c2, %c0_8, %c0_9] : memref<3x16x256xbf16, #tpu.memory_space<vmem>>, vector<1x16x256xbf16>
    %13 = vector.shape_cast %12 : vector<1x16x256xbf16> to vector<16x256xbf16>
    %cst_10 = arith.constant dense<0.000000e+00> : vector<128x256xf32>
    %14 = tpu.matmul %11, %13, %cst_10 {dimension_numbers = #tpu.dot_dimension_numbers<[1], [0], [0], [1], [0, 0, 1, 1], [], []>} : vector<128x16xbf16>, vector<16x256xbf16>, vector<128x256xf32> -> vector<128x256xf32>
    %15 = arith.addf %10, %14 : vector<128x256xf32>
    %c0_11 = arith.constant 0 : index
    %c0_12 = arith.constant 0 : index
    %16 = vector.load %arg3[%c0_11, %c0_12] : memref<1x256xf32, #tpu.memory_space<vmem>>, vector<1x256xf32>
    %17 = vector.broadcast %16 : vector<1x256xf32> to vector<128x256xf32>
    %18 = arith.addf %15, %17 : vector<128x256xf32>
    %cst_13 = arith.constant 0.000000e+00 : f32
    %19 = vector.broadcast %cst_13 : f32 to vector<128x256xf32>
    %20 = arith.cmpf oge, %18, %19 : vector<128x256xf32>
    %cst_14 = arith.constant 0.00999999977 : f32
    %21 = vector.broadcast %cst_14 : f32 to vector<128x256xf32>
    %22 = arith.mulf %21, %18 : vector<128x256xf32>
    %23 = arith.select %20, %18, %22 : vector<128x256xi1>, vector<128x256xf32>
    %24 = vector.extract_strided_slice %23 {offsets = [0, 0], sizes = [128, 128], strides = [1, 1]} : vector<128x256xf32> to vector<128x128xf32>
    %25 = vector.extract_strided_slice %23 {offsets = [0, 128], sizes = [128, 128], strides = [1, 1]} : vector<128x256xf32> to vector<128x128xf32>
    %26 = arith.addf %24, %25 : vector<128x128xf32>
    %cst_15 = arith.constant 0.000000e+00 : f32
    %27 = vector.broadcast %cst_15 : f32 to vector<1x128xf32>
    %cst_16 = arith.constant 0.000000e+00 : f32
    %28 = vector.broadcast %cst_16 : f32 to vector<1x128xf32>
    %29 = vector.extract_strided_slice %26 {offsets = [0, 0], sizes = [8, 128], strides = [1, 1]} : vector<128x128xf32> to vector<8x128xf32>
    %30 = vector.extract_strided_slice %26 {offsets = [8, 0], sizes = [8, 128], strides = [1, 1]} : vector<128x128xf32> to vector<8x128xf32>
    %31 = arith.addf %29, %30 : vector<8x128xf32>
    %cst_17 = arith.constant 2.500000e-01 : f32
    %32 = vector.broadcast %cst_17 : f32 to vector<8x128xf32>
    %33 = arith.mulf %32, %31 : vector<8x128xf32>
    %cst_18 = arith.constant dense<0.000000e+00> : vector<128xf32>
    %34 = vector.multi_reduction <add>, %33, %cst_18 [0] : vector<8x128xf32> to vector<128xf32>
    %35 = vector.shape_cast %34 : vector<128xf32> to vector<1x128xf32>
    %36 = arith.addf %27, %35 : vector<1x128xf32>
    %37 = arith.mulf %33, %33 : vector<8x128xf32>
    %cst_19 = arith.constant dense<0.000000e+00> : vector<128xf32>
    %38 = vector.multi_reduction <add>, %37, %cst_19 [0] : vector<8x128xf32> to vector<128xf32>
    %39 = vector.shape_cast %38 : vector<128xf32> to vector<1x128xf32>
    %40 = arith.addf %28, %39 : vector<1x128xf32>
    %41 = vector.extract_strided_slice %33 {offsets = [0, 0], sizes = [8, 8], strides = [1, 1]} : vector<8x128xf32> to vector<8x8xf32>
    %c0_20 = arith.constant 0 : index
    %c0_21 = arith.constant 0 : index
    %c0_22 = arith.constant 0 : index
    %c0_23 = arith.constant 0 : index
    %42 = vector.load %arg4[%c0_20, %c0_21, %c0_22, %c0_23] : memref<1x8x8x8xf32, #tpu.memory_space<vmem>>, vector<1x1x8x8xf32>
    %43 = vector.shape_cast %42 : vector<1x1x8x8xf32> to vector<8x8xf32>
    %44 = vector.shape_cast %41 : vector<8x8xf32> to vector<1x1x8x8xf32>
    tpu.vector_store %arg4[%c0_20, %c0_21, %c0_22, %c0_23], %44 {strides = array<i32>} : memref<1x8x8x8xf32, #tpu.memory_space<vmem>>, vector<1x1x8x8xf32>,
    %45 = vector.extract_strided_slice %26 {offsets = [16, 0], sizes = [8, 128], strides = [1, 1]} : vector<128x128xf32> to vector<8x128xf32>
    %46 = vector.extract_strided_slice %26 {offsets = [24, 0], sizes = [8, 128], strides = [1, 1]} : vector<128x128xf32> to vector<8x128xf32>
    %47 = arith.addf %45, %46 : vector<8x128xf32>
    %cst_24 = arith.constant 2.500000e-01 : f32
    %48 = vector.broadcast %cst_24 : f32 to vector<8x128xf32>
    %49 = arith.mulf %48, %47 : vector<8x128xf32>
    %cst_25 = arith.constant dense<0.000000e+00> : vector<128xf32>
    %50 = vector.multi_reduction <add>, %49, %cst_25 [0] : vector<8x128xf32> to vector<128xf32>
    %51 = vector.shape_cast %50 : vector<128xf32> to vector<1x128xf32>
    %52 = arith.addf %36, %51 : vector<1x128xf32>
    %53 = arith.mulf %49, %49 : vector<8x128xf32>
    %cst_26 = arith.constant dense<0.000000e+00> : vector<128xf32>
    %54 = vector.multi_reduction <add>, %53, %cst_26 [0] : vector<8x128xf32> to vector<128xf32>
    %55 = vector.shape_cast %54 : vector<128xf32> to vector<1x128xf32>
    %56 = arith.addf %40, %55 : vector<1x128xf32>
    %57 = vector.extract_strided_slice %49 {offsets = [0, 0], sizes = [8, 8], strides = [1, 1]} : vector<8x128xf32> to vector<8x8xf32>
    %c0_27 = arith.constant 0 : index
    %c1_28 = arith.constant 1 : index
    %c0_29 = arith.constant 0 : index
    %c0_30 = arith.constant 0 : index
    %58 = vector.load %arg4[%c0_27, %c1_28, %c0_29, %c0_30] : memref<1x8x8x8xf32, #tpu.memory_space<vmem>>, vector<1x1x8x8xf32>
    %59 = vector.shape_cast %58 : vector<1x1x8x8xf32> to vector<8x8xf32>
    %60 = vector.shape_cast %57 : vector<8x8xf32> to vector<1x1x8x8xf32>
    tpu.vector_store %arg4[%c0_27, %c1_28, %c0_29, %c0_30], %60 {strides = array<i32>} : memref<1x8x8x8xf32, #tpu.memory_space<vmem>>, vector<1x1x8x8xf32>,
    %61 = vector.extract_strided_slice %26 {offsets = [32, 0], sizes = [8, 128], strides = [1, 1]} : vector<128x128xf32> to vector<8x128xf32>
    %62 = vector.extract_strided_slice %26 {offsets = [40, 0], sizes = [8, 128], strides = [1, 1]} : vector<128x128xf32> to vector<8x128xf32>
    %63 = arith.addf %61, %62 : vector<8x128xf32>
    %cst_31 = arith.constant 2.500000e-01 : f32
    %64 = vector.broadcast %cst_31 : f32 to vector<8x128xf32>
    %65 = arith.mulf %64, %63 : vector<8x128xf32>
    %cst_32 = arith.constant dense<0.000000e+00> : vector<128xf32>
    %66 = vector.multi_reduction <add>, %65, %cst_32 [0] : vector<8x128xf32> to vector<128xf32>
    %67 = vector.shape_cast %66 : vector<128xf32> to vector<1x128xf32>
    %68 = arith.addf %52, %67 : vector<1x128xf32>
    %69 = arith.mulf %65, %65 : vector<8x128xf32>
    %cst_33 = arith.constant dense<0.000000e+00> : vector<128xf32>
    %70 = vector.multi_reduction <add>, %69, %cst_33 [0] : vector<8x128xf32> to vector<128xf32>
    %71 = vector.shape_cast %70 : vector<128xf32> to vector<1x128xf32>
    %72 = arith.addf %56, %71 : vector<1x128xf32>
    %73 = vector.extract_strided_slice %65 {offsets = [0, 0], sizes = [8, 8], strides = [1, 1]} : vector<8x128xf32> to vector<8x8xf32>
    %c0_34 = arith.constant 0 : index
    %c2_35 = arith.constant 2 : index
    %c0_36 = arith.constant 0 : index
    %c0_37 = arith.constant 0 : index
    %74 = vector.load %arg4[%c0_34, %c2_35, %c0_36, %c0_37] : memref<1x8x8x8xf32, #tpu.memory_space<vmem>>, vector<1x1x8x8xf32>
    %75 = vector.shape_cast %74 : vector<1x1x8x8xf32> to vector<8x8xf32>
    %76 = vector.shape_cast %73 : vector<8x8xf32> to vector<1x1x8x8xf32>
    tpu.vector_store %arg4[%c0_34, %c2_35, %c0_36, %c0_37], %76 {strides = array<i32>} : memref<1x8x8x8xf32, #tpu.memory_space<vmem>>, vector<1x1x8x8xf32>,
    %77 = vector.extract_strided_slice %26 {offsets = [48, 0], sizes = [8, 128], strides = [1, 1]} : vector<128x128xf32> to vector<8x128xf32>
    %78 = vector.extract_strided_slice %26 {offsets = [56, 0], sizes = [8, 128], strides = [1, 1]} : vector<128x128xf32> to vector<8x128xf32>
    %79 = arith.addf %77, %78 : vector<8x128xf32>
    %cst_38 = arith.constant 2.500000e-01 : f32
    %80 = vector.broadcast %cst_38 : f32 to vector<8x128xf32>
    %81 = arith.mulf %80, %79 : vector<8x128xf32>
    %cst_39 = arith.constant dense<0.000000e+00> : vector<128xf32>
    %82 = vector.multi_reduction <add>, %81, %cst_39 [0] : vector<8x128xf32> to vector<128xf32>
    %83 = vector.shape_cast %82 : vector<128xf32> to vector<1x128xf32>
    %84 = arith.addf %68, %83 : vector<1x128xf32>
    %85 = arith.mulf %81, %81 : vector<8x128xf32>
    %cst_40 = arith.constant dense<0.000000e+00> : vector<128xf32>
    %86 = vector.multi_reduction <add>, %85, %cst_40 [0] : vector<8x128xf32> to vector<128xf32>
    %87 = vector.shape_cast %86 : vector<128xf32> to vector<1x128xf32>
    %88 = arith.addf %72, %87 : vector<1x128xf32>
    %89 = vector.extract_strided_slice %81 {offsets = [0, 0], sizes = [8, 8], strides = [1, 1]} : vector<8x128xf32> to vector<8x8xf32>
    %c0_41 = arith.constant 0 : index
    %c3 = arith.constant 3 : index
    %c0_42 = arith.constant 0 : index
    %c0_43 = arith.constant 0 : index
    %90 = vector.load %arg4[%c0_41, %c3, %c0_42, %c0_43] : memref<1x8x8x8xf32, #tpu.memory_space<vmem>>, vector<1x1x8x8xf32>
    %91 = vector.shape_cast %90 : vector<1x1x8x8xf32> to vector<8x8xf32>
    %92 = vector.shape_cast %89 : vector<8x8xf32> to vector<1x1x8x8xf32>
    tpu.vector_store %arg4[%c0_41, %c3, %c0_42, %c0_43], %92 {strides = array<i32>} : memref<1x8x8x8xf32, #tpu.memory_space<vmem>>, vector<1x1x8x8xf32>,
    %93 = vector.extract_strided_slice %26 {offsets = [64, 0], sizes = [8, 128], strides = [1, 1]} : vector<128x128xf32> to vector<8x128xf32>
    %94 = vector.extract_strided_slice %26 {offsets = [72, 0], sizes = [8, 128], strides = [1, 1]} : vector<128x128xf32> to vector<8x128xf32>
    %95 = arith.addf %93, %94 : vector<8x128xf32>
    %cst_44 = arith.constant 2.500000e-01 : f32
    %96 = vector.broadcast %cst_44 : f32 to vector<8x128xf32>
    %97 = arith.mulf %96, %95 : vector<8x128xf32>
    %cst_45 = arith.constant dense<0.000000e+00> : vector<128xf32>
    %98 = vector.multi_reduction <add>, %97, %cst_45 [0] : vector<8x128xf32> to vector<128xf32>
    %99 = vector.shape_cast %98 : vector<128xf32> to vector<1x128xf32>
    %100 = arith.addf %84, %99 : vector<1x128xf32>
    %101 = arith.mulf %97, %97 : vector<8x128xf32>
    %cst_46 = arith.constant dense<0.000000e+00> : vector<128xf32>
    %102 = vector.multi_reduction <add>, %101, %cst_46 [0] : vector<8x128xf32> to vector<128xf32>
    %103 = vector.shape_cast %102 : vector<128xf32> to vector<1x128xf32>
    %104 = arith.addf %88, %103 : vector<1x128xf32>
    %105 = vector.extract_strided_slice %97 {offsets = [0, 0], sizes = [8, 8], strides = [1, 1]} : vector<8x128xf32> to vector<8x8xf32>
    %c0_47 = arith.constant 0 : index
    %c4 = arith.constant 4 : index
    %c0_48 = arith.constant 0 : index
    %c0_49 = arith.constant 0 : index
    %106 = vector.load %arg4[%c0_47, %c4, %c0_48, %c0_49] : memref<1x8x8x8xf32, #tpu.memory_space<vmem>>, vector<1x1x8x8xf32>
    %107 = vector.shape_cast %106 : vector<1x1x8x8xf32> to vector<8x8xf32>
    %108 = vector.shape_cast %105 : vector<8x8xf32> to vector<1x1x8x8xf32>
    tpu.vector_store %arg4[%c0_47, %c4, %c0_48, %c0_49], %108 {strides = array<i32>} : memref<1x8x8x8xf32, #tpu.memory_space<vmem>>, vector<1x1x8x8xf32>,
    %109 = vector.extract_strided_slice %26 {offsets = [80, 0], sizes = [8, 128], strides = [1, 1]} : vector<128x128xf32> to vector<8x128xf32>
    %110 = vector.extract_strided_slice %26 {offsets = [88, 0], sizes = [8, 128], strides = [1, 1]} : vector<128x128xf32> to vector<8x128xf32>
    %111 = arith.addf %109, %110 : vector<8x128xf32>
    %cst_50 = arith.constant 2.500000e-01 : f32
    %112 = vector.broadcast %cst_50 : f32 to vector<8x128xf32>
    %113 = arith.mulf %112, %111 : vector<8x128xf32>
    %cst_51 = arith.constant dense<0.000000e+00> : vector<128xf32>
    %114 = vector.multi_reduction <add>, %113, %cst_51 [0] : vector<8x128xf32> to vector<128xf32>
    %115 = vector.shape_cast %114 : vector<128xf32> to vector<1x128xf32>
    %116 = arith.addf %100, %115 : vector<1x128xf32>
    %117 = arith.mulf %113, %113 : vector<8x128xf32>
    %cst_52 = arith.constant dense<0.000000e+00> : vector<128xf32>
    %118 = vector.multi_reduction <add>, %117, %cst_52 [0] : vector<8x128xf32> to vector<128xf32>
    %119 = vector.shape_cast %118 : vector<128xf32> to vector<1x128xf32>
    %120 = arith.addf %104, %119 : vector<1x128xf32>
    %121 = vector.extract_strided_slice %113 {offsets = [0, 0], sizes = [8, 8], strides = [1, 1]} : vector<8x128xf32> to vector<8x8xf32>
    %c0_53 = arith.constant 0 : index
    %c5 = arith.constant 5 : index
    %c0_54 = arith.constant 0 : index
    %c0_55 = arith.constant 0 : index
    %122 = vector.load %arg4[%c0_53, %c5, %c0_54, %c0_55] : memref<1x8x8x8xf32, #tpu.memory_space<vmem>>, vector<1x1x8x8xf32>
    %123 = vector.shape_cast %122 : vector<1x1x8x8xf32> to vector<8x8xf32>
    %124 = vector.shape_cast %121 : vector<8x8xf32> to vector<1x1x8x8xf32>
    tpu.vector_store %arg4[%c0_53, %c5, %c0_54, %c0_55], %124 {strides = array<i32>} : memref<1x8x8x8xf32, #tpu.memory_space<vmem>>, vector<1x1x8x8xf32>,
    %125 = vector.extract_strided_slice %26 {offsets = [96, 0], sizes = [8, 128], strides = [1, 1]} : vector<128x128xf32> to vector<8x128xf32>
    %126 = vector.extract_strided_slice %26 {offsets = [104, 0], sizes = [8, 128], strides = [1, 1]} : vector<128x128xf32> to vector<8x128xf32>
    %127 = arith.addf %125, %126 : vector<8x128xf32>
    %cst_56 = arith.constant 2.500000e-01 : f32
    %128 = vector.broadcast %cst_56 : f32 to vector<8x128xf32>
    %129 = arith.mulf %128, %127 : vector<8x128xf32>
    %cst_57 = arith.constant dense<0.000000e+00> : vector<128xf32>
    %130 = vector.multi_reduction <add>, %129, %cst_57 [0] : vector<8x128xf32> to vector<128xf32>
    %131 = vector.shape_cast %130 : vector<128xf32> to vector<1x128xf32>
    %132 = arith.addf %116, %131 : vector<1x128xf32>
    %133 = arith.mulf %129, %129 : vector<8x128xf32>
    %cst_58 = arith.constant dense<0.000000e+00> : vector<128xf32>
    %134 = vector.multi_reduction <add>, %133, %cst_58 [0] : vector<8x128xf32> to vector<128xf32>
    %135 = vector.shape_cast %134 : vector<128xf32> to vector<1x128xf32>
    %136 = arith.addf %120, %135 : vector<1x128xf32>
    %137 = vector.extract_strided_slice %129 {offsets = [0, 0], sizes = [8, 8], strides = [1, 1]} : vector<8x128xf32> to vector<8x8xf32>
    %c0_59 = arith.constant 0 : index
    %c6 = arith.constant 6 : index
    %c0_60 = arith.constant 0 : index
    %c0_61 = arith.constant 0 : index
    %138 = vector.load %arg4[%c0_59, %c6, %c0_60, %c0_61] : memref<1x8x8x8xf32, #tpu.memory_space<vmem>>, vector<1x1x8x8xf32>
    %139 = vector.shape_cast %138 : vector<1x1x8x8xf32> to vector<8x8xf32>
    %140 = vector.shape_cast %137 : vector<8x8xf32> to vector<1x1x8x8xf32>
    tpu.vector_store %arg4[%c0_59, %c6, %c0_60, %c0_61], %140 {strides = array<i32>} : memref<1x8x8x8xf32, #tpu.memory_space<vmem>>, vector<1x1x8x8xf32>,
    %141 = vector.extract_strided_slice %26 {offsets = [112, 0], sizes = [8, 128], strides = [1, 1]} : vector<128x128xf32> to vector<8x128xf32>
    %142 = vector.extract_strided_slice %26 {offsets = [120, 0], sizes = [8, 128], strides = [1, 1]} : vector<128x128xf32> to vector<8x128xf32>
    %143 = arith.addf %141, %142 : vector<8x128xf32>
    %cst_62 = arith.constant 2.500000e-01 : f32
    %144 = vector.broadcast %cst_62 : f32 to vector<8x128xf32>
    %145 = arith.mulf %144, %143 : vector<8x128xf32>
    %cst_63 = arith.constant dense<0.000000e+00> : vector<128xf32>
    %146 = vector.multi_reduction <add>, %145, %cst_63 [0] : vector<8x128xf32> to vector<128xf32>
    %147 = vector.shape_cast %146 : vector<128xf32> to vector<1x128xf32>
    %148 = arith.addf %132, %147 : vector<1x128xf32>
    %149 = arith.mulf %145, %145 : vector<8x128xf32>
    %cst_64 = arith.constant dense<0.000000e+00> : vector<128xf32>
    %150 = vector.multi_reduction <add>, %149, %cst_64 [0] : vector<8x128xf32> to vector<128xf32>
    %151 = vector.shape_cast %150 : vector<128xf32> to vector<1x128xf32>
    %152 = arith.addf %136, %151 : vector<1x128xf32>
    %153 = vector.extract_strided_slice %145 {offsets = [0, 0], sizes = [8, 8], strides = [1, 1]} : vector<8x128xf32> to vector<8x8xf32>
    %c0_65 = arith.constant 0 : index
    %c7 = arith.constant 7 : index
    %c0_66 = arith.constant 0 : index
    %c0_67 = arith.constant 0 : index
    %154 = vector.load %arg4[%c0_65, %c7, %c0_66, %c0_67] : memref<1x8x8x8xf32, #tpu.memory_space<vmem>>, vector<1x1x8x8xf32>
    %155 = vector.shape_cast %154 : vector<1x1x8x8xf32> to vector<8x8xf32>
    %156 = vector.shape_cast %153 : vector<8x8xf32> to vector<1x1x8x8xf32>
    tpu.vector_store %arg4[%c0_65, %c7, %c0_66, %c0_67], %156 {strides = array<i32>} : memref<1x8x8x8xf32, #tpu.memory_space<vmem>>, vector<1x1x8x8xf32>,
    %c0_68 = arith.constant 0 : index
    %c0_69 = arith.constant 0 : index
    %c0_70 = arith.constant 0 : index
    %157 = vector.load %arg5[%c0_68, %c0_69, %c0_70] : memref<1x1x128xf32, #tpu.memory_space<vmem>>, vector<1x1x128xf32>
    %158 = vector.shape_cast %157 : vector<1x1x128xf32> to vector<1x128xf32>
    %159 = vector.shape_cast %148 : vector<1x128xf32> to vector<1x1x128xf32>
    tpu.vector_store %arg5[%c0_68, %c0_69, %c0_70], %159 {strides = array<i32>} : memref<1x1x128xf32, #tpu.memory_space<vmem>>, vector<1x1x128xf32>,
    %c0_71 = arith.constant 0 : index
    %c0_72 = arith.constant 0 : index
    %c0_73 = arith.constant 0 : index
    %160 = vector.load %arg6[%c0_71, %c0_72, %c0_73] : memref<1x1x128xf32, #tpu.memory_space<vmem>>, vector<1x1x128xf32>
    %161 = vector.shape_cast %160 : vector<1x1x128xf32> to vector<1x128xf32>
    %162 = vector.shape_cast %152 : vector<1x128xf32> to vector<1x1x128xf32>
    tpu.vector_store %arg6[%c0_71, %c0_72, %c0_73], %162 {strides = array<i32>} : memref<1x1x128xf32, #tpu.memory_space<vmem>>, vector<1x1x128xf32>,
    return
  }
  func.func @transform_0(%arg0: i32) -> (i32, i32, i32) {
    %c0_i32 = arith.constant 0 : i32
    %c0_i32_0 = arith.constant 0 : i32
    %c0_i32_1 = arith.constant 0 : i32
    return %arg0, %c0_i32, %c0_i32_0 : i32, i32, i32
  }
  func.func @transform_1(%arg0: i32) -> (i32, i32, i32) {
    %c0_i32 = arith.constant 0 : i32
    %c0_i32_0 = arith.constant 0 : i32
    %c0_i32_1 = arith.constant 0 : i32
    %c0_i32_2 = arith.constant 0 : i32
    return %c0_i32, %c0_i32_0, %c0_i32_1 : i32, i32, i32
  }
  func.func @transform_2(%arg0: i32) -> (i32, i32) {
    %c0_i32 = arith.constant 0 : i32
    %c0_i32_0 = arith.constant 0 : i32
    %c0_i32_1 = arith.constant 0 : i32
    return %c0_i32, %c0_i32_0 : i32, i32
  }
  func.func @transform_3(%arg0: i32) -> (i32, i32, i32, i32) {
    %c0_i32 = arith.constant 0 : i32
    %c0_i32_0 = arith.constant 0 : i32
    %c0_i32_1 = arith.constant 0 : i32
    %c0_i32_2 = arith.constant 0 : i32
    return %arg0, %c0_i32, %c0_i32_0, %c0_i32_1 : i32, i32, i32, i32
  }
  func.func @transform_4(%arg0: i32) -> (i32, i32, i32) {
    %c0_i32 = arith.constant 0 : i32
    %c0_i32_0 = arith.constant 0 : i32
    %c0_i32_1 = arith.constant 0 : i32
    return %arg0, %c0_i32, %c0_i32_0 : i32, i32, i32
  }
  func.func @transform_5(%arg0: i32) -> (i32, i32, i32) {
    %c0_i32 = arith.constant 0 : i32
    %c0_i32_0 = arith.constant 0 : i32
    %c0_i32_1 = arith.constant 0 : i32
    return %arg0, %c0_i32, %c0_i32_0 : i32, i32, i32
  }
}

</mosaic_0001>

<llo_original>
// kernel: tpu_custom_call.1
$region0: #{tpu_custom_call.1}
  #allocation0 [shape = 'u32[]', space=smem, size = 0x4, offset = 0x4, fixed_abs, tag = 'smem constant byte address 0x4 - core index']
  #allocation1 [shape = 'u32[144,128]{1,0:T(1,128)}', space=vmem, size = 0x12000, scoped, tag = 'internal scratch']
  %s0 = inlined_call_operand.vmem [shape: bf16[2,144,16], index: 0, kind: input, shape index: {}]
  %s1 = inlined_call_operand.vmem [shape: bf16[3,16,256], index: 1, kind: input, shape index: {}]
  %s2 = inlined_call_operand.vmem [shape: f32[1,256], index: 2, kind: input, shape index: {}]
  %s3 = inlined_call_operand.hbm [shape: f32[2,8,8,8], index: 3, kind: output, shape index: {0}]
  %s4 = inlined_call_operand.hbm [shape: f32[2,1,128], index: 4, kind: output, shape index: {1}]
  %s5 = inlined_call_operand.hbm [shape: f32[2,1,128], index: 5, kind: output, shape index: {2}]
  %6 = xla_tuple %s3, %s4, %s5
  %s7 = sld [smem:[#allocation0]]
  $region61: #{tpu_custom_call.1} parent=0
    _
  %s9 = ssub.s32 1, %s7
  %s10 = scalar_select 0, %s9, %s7
  $region1: #{tpu_custom_call.1} parent=0
    #allocation2 [shape = 'u8[65536]{0}', space=vmem, size = 0x10000, scoped, tag = 'output window, operand 0']
    #allocation3 [shape = 's32[2]{0}', space=sflag, size = 0x8, scoped, tag = 'scoped memory for tpu_custom_call.1']
    #allocation4 [shape = 'u8[1024]{0}', space=vmem, size = 0x400, scoped, tag = 'output window, operand 1']
    #allocation5 [shape = 's32[2]{0}', space=sflag, size = 0x8, scoped, tag = 'scoped memory for tpu_custom_call.1']
    #allocation6 [shape = 'u8[1024]{0}', space=vmem, size = 0x400, scoped, tag = 'output window, operand 2']
    %11 = vsyncpa [#allocation3], 0
    %s12 = scalar_lea.sflag [#allocation3], 1
    %13 = vsyncpa %s12, 0
    %14 = vsyncpa [#allocation5], 0
    %s15 = scalar_lea.sflag [#allocation5], 1
    %16 = vsyncpa %s15, 0
    loop: start=0, step=1, limit=4
    $region2: #{tpu_custom_call.1} parent=1 // loop_pre_header
      _
    $region3: #{tpu_custom_call.1} parent=1 // loop_header
      %s18 = sphi 0, %s22
      %p19 = scmp.ge.s32.totalorder %s18, 4
      %s28 = sphi 0, %s30
      %s31 = sphi 0, %s28
      %s32 = sphi 0, %s31
      %s48 = sphi 0, %s32
      %s52 = sphi 0, %s52
      %s54 = sphi 0, %s52
      %s55 = sphi 0, %s54
      %s69 = sphi 0, %s55
      %s73 = sphi 0, %s73
      %s75 = sphi 0, %s73
      %s76 = sphi 0, %s75
      %s90 = sphi 0, %s76
      %s96 = sphi 0, %s98
      %s99 = sphi 0, %s96
      %s100 = sphi 0, %s99
      %s116 = sphi 0, %s100
      %s122 = sphi 0, %s124
      %s125 = sphi 0, %s122
      %s126 = sphi 0, %s125
      %s142 = sphi 0, %s126
      %s148 = sphi 0, %s150
      %s151 = sphi 0, %s148
      %s152 = sphi 0, %s151
      %s168 = sphi 0, %s152
    $region4: #{tpu_custom_call.1} parent=1 // loop_header_branch
      %21 = sbr.rel (%p19) target = $region8
    $region5: #{tpu_custom_call.1} parent=1 // loop_body
      %s23 = ssub.s32 %s18, 1
      %s24 = ssub.s32 %s18, 2
      %s25 = sadd.s32 %s18, 1
      %s26 = ssub.s32 %s18, %s25
      %p27 = scmp.eq.s32.totalorder %s26, 0
      %s29 = sadd.s32 %s28, 1
      %s30 = scalar_select %p27, %s28, %s29
      %p33 = pneg %p27
      %p34 = scmp.eq.s32.totalorder %s18, 1
      %p35 = por %p33, %p34
      %p36 = scmp.ne.s32.totalorder %s28, %s31
      %p37 = scmp.eq.s32.totalorder %s18, 0
      %p38 = por %p36, %p37
      %p39 = scmp.ne.s32.totalorder %s28, %s31
      %p40 = scmp.eq.s32.totalorder %s23, 1
      %p41 = por %p39, %p40
      %p42 = scmp.ne.s32.totalorder %s31, %s32
      %p43 = scmp.eq.s32.totalorder %s23, 0
      %p44 = por %p42, %p43
      %p45 = scmp.ne.s32.totalorder %s31, %s32
      %p46 = scmp.eq.s32.totalorder %s24, 1
      %p47 = por %p45, %p46
      %p49 = scmp.ne.s32.totalorder %s32, %s48
      %p50 = scmp.eq.s32.totalorder %s24, 0
      %p51 = por %p49, %p50
      %s53 = sadd.s32 %s52, 1
      %p56 = scmp.eq.s32.totalorder %s18, 1
      %p57 = scmp.ne.s32.totalorder %s52, %s54
      %p58 = scmp.eq.s32.totalorder %s18, 0
      %p59 = por %p57, %p58
      %p60 = scmp.ne.s32.totalorder %s52, %s54
      %p61 = scmp.eq.s32.totalorder %s23, 1
      %p62 = por %p60, %p61
      %p63 = scmp.ne.s32.totalorder %s54, %s55
      %p64 = scmp.eq.s32.totalorder %s23, 0
      %p65 = por %p63, %p64
      %p66 = scmp.ne.s32.totalorder %s54, %s55
      %p67 = scmp.eq.s32.totalorder %s24, 1
      %p68 = por %p66, %p67
      %p70 = scmp.ne.s32.totalorder %s55, %s69
      %p71 = scmp.eq.s32.totalorder %s24, 0
      %p72 = por %p70, %p71
      %s74 = sadd.s32 %s73, 1
      %p77 = scmp.eq.s32.totalorder %s18, 1
      %p78 = scmp.ne.s32.totalorder %s73, %s75
      %p79 = scmp.eq.s32.totalorder %s18, 0
      %p80 = por %p78, %p79
      %p81 = scmp.ne.s32.totalorder %s73, %s75
      %p82 = scmp.eq.s32.totalorder %s23, 1
      %p83 = por %p81, %p82
      %p84 = scmp.ne.s32.totalorder %s75, %s76
      %p85 = scmp.eq.s32.totalorder %s23, 0
      %p86 = por %p84, %p85
      %p87 = scmp.ne.s32.totalorder %s75, %s76
      %p88 = scmp.eq.s32.totalorder %s24, 1
      %p89 = por %p87, %p88
      %p91 = scmp.ne.s32.totalorder %s76, %s90
      %p92 = scmp.eq.s32.totalorder %s24, 0
      %p93 = por %p91, %p92
      %s94 = ssub.s32 %s18, %s25
      %p95 = scmp.eq.s32.totalorder %s94, 0
      %s97 = sadd.s32 %s96, 1
      %s98 = scalar_select %p95, %s96, %s97
      %p101 = pneg %p95
      %p102 = scmp.eq.s32.totalorder %s18, 1
      %p103 = por %p101, %p102
      %p104 = scmp.ne.s32.totalorder %s96, %s99
      %p105 = scmp.eq.s32.totalorder %s18, 0
      %p106 = por %p104, %p105
      %p107 = scmp.ne.s32.totalorder %s96, %s99
      %p108 = scmp.eq.s32.totalorder %s23, 1
      %p109 = por %p107, %p108
      %p110 = scmp.ne.s32.totalorder %s99, %s100
      %p111 = scmp.eq.s32.totalorder %s23, 0
      %p112 = por %p110, %p111
      %p113 = scmp.ne.s32.totalorder %s99, %s100
      %p114 = scmp.eq.s32.totalorder %s24, 1
      %p115 = por %p113, %p114
      %p117 = scmp.ne.s32.totalorder %s100, %s116
      %p118 = scmp.eq.s32.totalorder %s24, 0
      %p119 = por %p117, %p118
      %s120 = ssub.s32 %s18, %s25
      %p121 = scmp.eq.s32.totalorder %s120, 0
      %s123 = sadd.s32 %s122, 1
      %s124 = scalar_select %p121, %s122, %s123
      %p127 = pneg %p121
      %p128 = scmp.eq.s32.totalorder %s18, 1
      %p129 = por %p127, %p128
      %p130 = scmp.ne.s32.totalorder %s122, %s125
      %p131 = scmp.eq.s32.totalorder %s18, 0
      %p132 = por %p130, %p131
      %p133 = scmp.ne.s32.totalorder %s122, %s125
      %p134 = scmp.eq.s32.totalorder %s23, 1
      %p135 = por %p133, %p134
      %p136 = scmp.ne.s32.totalorder %s125, %s126
      %p137 = scmp.eq.s32.totalorder %s23, 0
      %p138 = por %p136, %p137
      %p139 = scmp.ne.s32.totalorder %s125, %s126
      %p140 = scmp.eq.s32.totalorder %s24, 1
      %p141 = por %p139, %p140
      %p143 = scmp.ne.s32.totalorder %s126, %s142
      %p144 = scmp.eq.s32.totalorder %s24, 0
      %p145 = por %p143, %p144
      %s146 = ssub.s32 %s18, %s25
      %p147 = scmp.eq.s32.totalorder %s146, 0
      %s149 = sadd.s32 %s148, 1
      %s150 = scalar_select %p147, %s148, %s149
      %p153 = pneg %p147
      %p154 = scmp.eq.s32.totalorder %s18, 1
      %p155 = por %p153, %p154
      %p156 = scmp.ne.s32.totalorder %s148, %s151
      %p157 = scmp.eq.s32.totalorder %s18, 0
      %p158 = por %p156, %p157
      %p159 = scmp.ne.s32.totalorder %s148, %s151
      %p160 = scmp.eq.s32.totalorder %s23, 1
      %p161 = por %p159, %p160
      %p162 = scmp.ne.s32.totalorder %s151, %s152
      %p163 = scmp.eq.s32.totalorder %s23, 0
      %p164 = por %p162, %p163
      %p165 = scmp.ne.s32.totalorder %s151, %s152
      %p166 = scmp.eq.s32.totalorder %s24, 1
      %p167 = por %p165, %p166
      %p169 = scmp.ne.s32.totalorder %s152, %s168
      %p170 = scmp.eq.s32.totalorder %s24, 0
      %p171 = por %p169, %p170
      %p172 = scmp.le.s32.totalorder 1, %s18
      %p173 = scmp.lt.s32.totalorder %s18, 3
      %p174 = pnand %p172, %p173
      %p175 = pneg %p174
      // Predicated region
      $region9: #{tpu_custom_call.1} parent=5 // pred_check
        _
      $region10: #{tpu_custom_call.1} parent=5 // pred_check_branch
        %177 = sbr.rel (%p174) target = $region12
      $region11: #{tpu_custom_call.1} parent=5 // pred_region
        %s178 = ssub.s32 %s18, 1
        // Predicated region
        $region13: #{tpu_custom_call.1} parent=11 // pred_check
          %p179 = pneg %p65
        $region14: #{tpu_custom_call.1} parent=11 // pred_check_branch
          %181 = sbr.rel (%p179) target = $region16
        $region15: #{tpu_custom_call.1} parent=11 // pred_region
          _
        $region16: #{tpu_custom_call.1} parent=11 // pred_fallthru
          _
        // Predicated region
        $region17: #{tpu_custom_call.1} parent=11 // pred_check
          %p182 = pneg %p86
        $region18: #{tpu_custom_call.1} parent=11 // pred_check_branch
          %184 = sbr.rel (%p182) target = $region20
        $region19: #{tpu_custom_call.1} parent=11 // pred_region
          _
        $region20: #{tpu_custom_call.1} parent=11 // pred_fallthru
          _
      $region12: #{tpu_custom_call.1} parent=5 // pred_fallthru
        _
      %p185 = scmp.lt.s32.totalorder %s18, 2
      // Predicated region
      $region21: #{tpu_custom_call.1} parent=5 // pred_check
        %p186 = pneg %p185
      $region22: #{tpu_custom_call.1} parent=5 // pred_check_branch
        %188 = sbr.rel (%p186) target = $region24
      $region23: #{tpu_custom_call.1} parent=5 // pred_region
        // Predicated region
        $region25: #{tpu_custom_call.1} parent=23 // pred_check
          %p189 = pneg %p38
        $region26: #{tpu_custom_call.1} parent=23 // pred_check_branch
          %191 = sbr.rel (%p189) target = $region28
        $region27: #{tpu_custom_call.1} parent=23 // pred_region
          %p192 = scmp.lt.s32.totalorder %s18, 1
          %s193 = scalar_select %p192, %s18, 1
          %s194 = smul.addr %s193, 18
          %s195 = smul.addr %s194, 4
          %s196 = scalar_lea.vmem %s0, %s195
        $region28: #{tpu_custom_call.1} parent=23 // pred_fallthru
          _
      $region24: #{tpu_custom_call.1} parent=5 // pred_fallthru
        _
      %p197 = scmp.le.s32.totalorder 1, %s18
      %p198 = scmp.lt.s32.totalorder %s18, 3
      %p199 = pnand %p197, %p198
      %p200 = pneg %p199
      // Predicated region
      $region29: #{tpu_custom_call.1} parent=5 // pred_check
        _
      $region30: #{tpu_custom_call.1} parent=5 // pred_check_branch
        %202 = sbr.rel (%p199) target = $region32
      $region31: #{tpu_custom_call.1} parent=5 // pred_region
        %s203 = ssub.s32 %s18, 1
        %p204 = scmp.lt.s32.totalorder %s23, 1
        %s205 = scalar_select %p204, %s23, 1
        %s206 = smul.addr %s205, 18
        %s207 = smul.addr %s206, 4
        %s208 = scalar_lea.vmem %s0, %s207
        %p209 = pneg %p44
        %p210 = pneg %p41
        %p211 = pneg %p65
        %p212 = pneg %p62
        %p213 = pneg %p86
        %p214 = pneg %p83
        %p215 = pneg %p112
        %p216 = pneg %p109
        %s217 = sand.u32 %s99, 1
        %s218 = scalar_lea.sflag [#allocation3], %s217
        %s219 = sand.u32 %s99, 1
        %s220 = smul.addr %s219, 64
        %s221 = scalar_lea.vmem [#allocation2], %s220
        %p222 = pneg %p138
        %p223 = pneg %p135
        %s224 = sand.u32 %s23, 1
        %s225 = scalar_lea.sflag [#allocation5], %s224
        %s226 = sand.u32 %s125, 1
        %s227 = scalar_lea.vmem [#allocation4], %s226
        %p228 = pneg %p164
        %p229 = pneg %p161
        %s230 = sand.u32 %s23, 1
        %s231 = scalar_lea.sflag [#allocation5], %s230
        %s232 = sand.u32 %s151, 1
        %s233 = scalar_lea.vmem [#allocation6], %s232
        %p234 = scmp.lt.s32.totalorder %s23, 1
        %s235 = scalar_select %p234, %s23, 1
        %s236 = smul.addr %s235, 18
        %s237 = smul.addr %s236, 4
        %s238 = scalar_lea.vmem %s0, %s237
        %v240 = vld [vmem:[%s238] sm:$0xf]
        %v241 = vld [vmem:[%s238 + $0x4] sm:$0xf]
        %v242 = vld [vmem:[%s238 + $0x8] sm:$0xf]
        %v243 = vld [vmem:[%s238 + $0xc] sm:$0xf]
        %v244 = vld [vmem:[%s238 + $0x10] sm:$0xf]
        %v245 = vld [vmem:[%s238 + $0x14] sm:$0xf]
        %v246 = vld [vmem:[%s238 + $0x18] sm:$0xf]
        %v247 = vld [vmem:[%s238 + $0x1c] sm:$0xf]
        %v248 = vld [vmem:[%s238 + $0x20] sm:$0xf]
        %v249 = vld [vmem:[%s238 + $0x24] sm:$0xf]
        %v250 = vld [vmem:[%s238 + $0x28] sm:$0xf]
        %v251 = vld [vmem:[%s238 + $0x2c] sm:$0xf]
        %v252 = vld [vmem:[%s238 + $0x30] sm:$0xf]
        %v253 = vld [vmem:[%s238 + $0x34] sm:$0xf]
        %v254 = vld [vmem:[%s238 + $0x38] sm:$0xf]
        %v255 = vld [vmem:[%s238 + $0x3c] sm:$0xf]
        %v256 = vld [vmem:[%s238 + $0x40] sm:$0xf]
        %v257 = vld [vmem:[%s238 + $0x44] sm:$0xf]
        %v258 = vld [vmem:[%s1] sm:$0xff]
        %v259 = vld [vmem:[%s1 + $0x8] sm:$0xff]
        %s260 = scalar_lea.vmem %s1, 16
        %v261 = vld [vmem:[%s260] sm:$0xff]
        %v262 = vld [vmem:[%s260 + $0x8] sm:$0xff]
        %v279 = vunpack.c.l.b16 %v241
        %v280 = vunpack.c.l.b16 %v242
        %v281 = vunpack.c.l.b16 %v243
        %v282 = vunpack.c.l.b16 %v244
        %v283 = vunpack.c.l.b16 %v245
        %v284 = vunpack.c.l.b16 %v246
        %v285 = vunpack.c.l.b16 %v247
        %v286 = vunpack.c.l.b16 %v248
        %v287 = vunpack.c.l.b16 %v249
        %v288 = vunpack.c.l.b16 %v250
        %v289 = vunpack.c.l.b16 %v251
        %v290 = vunpack.c.l.b16 %v252
        %v291 = vunpack.c.l.b16 %v253
        %v292 = vunpack.c.l.b16 %v254
        %v293 = vunpack.c.l.b16 %v255
        %v294 = vunpack.c.l.b16 %v256
        %v295 = vpack.c.b16 %v280, %v279
        %v296 = vpack.c.b16 %v282, %v281
        %v297 = vpack.c.b16 %v284, %v283
        %v298 = vpack.c.b16 %v286, %v285
        %v299 = vpack.c.b16 %v288, %v287
        %v300 = vpack.c.b16 %v290, %v289
        %v301 = vpack.c.b16 %v292, %v291
        %v302 = vpack.c.b16 %v294, %v293
        %v305 = vunpack.c.l.b16 %v261
        %v306 = vunpack.c.h.b16 %v261
        %v307 = vunpack.c.l.b16 %v262
        %v308 = vunpack.c.h.b16 %v262
        %v309 = vpack.c.b16 %v307, %v305
        %v310 = vpack.c.b16 %v308, %v306
        %vm313 = vcmask 130048
        %v315 = vsel %vm313, %v295, 0
        %v318 = vsel %vm313, %v296, 0
        %v321 = vsel %vm313, %v297, 0
        %v324 = vsel %vm313, %v298, 0
        %v327 = vsel %vm313, %v299, 0
        %v330 = vsel %vm313, %v300, 0
        %v333 = vsel %vm313, %v301, 0
        %v336 = vsel %vm313, %v302, 0
        %338 = vmatprep.subr.bf16.mxu0 0
        %339 = vmatpush1.bf16.msra.mxu0 0
        %340 = vmatprep.subr.bf16.mxu0 0
        %341 = vmatpush1.bf16.msra.mxu0 0
        %342 = vmatprep.subr.bf16.mxu0 0
        %343 = vmatpush1.bf16.msra.mxu0 0
        %344 = vmatprep.subr.bf16.mxu0 0
        %345 = vmatpush1.bf16.msra.mxu0 0
        %346 = vmatprep.subr.bf16.mxu0 0
        %347 = vmatpush1.bf16.msra.mxu0 0
        %348 = vmatprep.subr.bf16.mxu0 0
        %349 = vmatpush1.bf16.msra.mxu0 0
        %350 = vmatprep.subr.bf16.mxu0 0
        %351 = vmatpush1.bf16.msra.mxu0 0
        %352 = vmatprep.subr.bf16.mxu0 %v310
        %353 = vmatpush1.bf16.msra.mxu0 %v309
        %354 = vmatprep.subr.bf16.mxu0 0
        %355 = vmatpush2.bf16.msra.mxu0 0
        %356 = vmatprep.subr.bf16.mxu0 0
        %357 = vmatpush2.bf16.msra.mxu0 0
        %358 = vmatprep.subr.bf16.mxu0 0
        %359 = vmatpush2.bf16.msra.mxu0 0
        %360 = vmatprep.subr.bf16.mxu0 0
        %361 = vmatpush2.bf16.msra.mxu0 0
        %362 = vmatprep.subr.bf16.mxu0 0
        %363 = vmatpush2.bf16.msra.mxu0 0
        %364 = vmatprep.subr.bf16.mxu0 0
        %365 = vmatpush2.bf16.msra.mxu0 0
        %366 = vmatprep.subr.bf16.mxu0 0
        %367 = vmatpush2.bf16.msra.mxu0 0
        %368 = vmatprep.subr.bf16.mxu0 0
        %369 = vmatpush2.bf16.msra.mxu0 0
        %370 = vmatprep.mubr.bf16.mxu0 0
        %371 = vmatmul.mubr.bf16.gmra.mxu0 %v315
        %v372 = vpop.f32.mrf.mxu0
        %v373 = vadd.f32 0.0, %v372
        %v374 = vpop.f32.mrf.mxu0
        %v375 = vadd.f32 0.0, %v374
        %v376 = vpop.f32.mrf.mxu0
        %v377 = vadd.f32 0.0, %v376
        %v378 = vpop.f32.mrf.mxu0
        %v379 = vadd.f32 0.0, %v378
        %380 = vmatprep.mubr.bf16.mxu0 0
        %381 = vmatmul.mubr.bf16.gmra.mxu0 %v318
        %v382 = vpop.f32.mrf.mxu0
        %v383 = vadd.f32 0.0, %v382
        %v384 = vpop.f32.mrf.mxu0
        %v385 = vadd.f32 0.0, %v384
        %v386 = vpop.f32.mrf.mxu0
        %v387 = vadd.f32 0.0, %v386
        %v388 = vpop.f32.mrf.mxu0
        %v389 = vadd.f32 0.0, %v388
        %390 = vmatprep.mubr.bf16.mxu0 0
        %391 = vmatmul.mubr.bf16.gmra.mxu0 %v321
        %v392 = vpop.f32.mrf.mxu0
        %v393 = vadd.f32 0.0, %v392
        %v394 = vpop.f32.mrf.mxu0
        %v395 = vadd.f32 0.0, %v394
        %v396 = vpop.f32.mrf.mxu0
        %v397 = vadd.f32 0.0, %v396
        %v398 = vpop.f32.mrf.mxu0
        %v399 = vadd.f32 0.0, %v398
        %400 = vmatprep.mubr.bf16.mxu0 0
        %401 = vmatmul.mubr.bf16.gmra.mxu0 %v324
        %v402 = vpop.f32.mrf.mxu0
        %v403 = vadd.f32 0.0, %v402
        %v404 = vpop.f32.mrf.mxu0
        %v405 = vadd.f32 0.0, %v404
        %v406 = vpop.f32.mrf.mxu0
        %v407 = vadd.f32 0.0, %v406
        %v408 = vpop.f32.mrf.mxu0
        %v409 = vadd.f32 0.0, %v408
        %410 = vmatprep.mubr.bf16.mxu0 0
        %411 = vmatmul.mubr.bf16.gmra.mxu0 %v327
        %v412 = vpop.f32.mrf.mxu0
        %v413 = vadd.f32 0.0, %v412
        %v414 = vpop.f32.mrf.mxu0
        %v415 = vadd.f32 0.0, %v414
        %v416 = vpop.f32.mrf.mxu0
        %v417 = vadd.f32 0.0, %v416
        %v418 = vpop.f32.mrf.mxu0
        %v419 = vadd.f32 0.0, %v418
        %420 = vmatprep.mubr.bf16.mxu0 0
        %421 = vmatmul.mubr.bf16.gmra.mxu0 %v330
        %v422 = vpop.f32.mrf.mxu0
        %v423 = vadd.f32 0.0, %v422
        %v424 = vpop.f32.mrf.mxu0
        %v425 = vadd.f32 0.0, %v424
        %v426 = vpop.f32.mrf.mxu0
        %v427 = vadd.f32 0.0, %v426
        %v428 = vpop.f32.mrf.mxu0
        %v429 = vadd.f32 0.0, %v428
        %430 = vmatprep.mubr.bf16.mxu0 0
        %431 = vmatmul.mubr.bf16.gmra.mxu0 %v333
        %v432 = vpop.f32.mrf.mxu0
        %v433 = vadd.f32 0.0, %v432
        %v434 = vpop.f32.mrf.mxu0
        %v435 = vadd.f32 0.0, %v434
        %v436 = vpop.f32.mrf.mxu0
        %v437 = vadd.f32 0.0, %v436
        %v438 = vpop.f32.mrf.mxu0
        %v439 = vadd.f32 0.0, %v438
        %440 = vmatprep.mubr.bf16.mxu0 0
        %441 = vmatmul.mubr.bf16.gmra.mxu0 %v336
        %v442 = vpop.f32.mrf.mxu0
        %v443 = vadd.f32 0.0, %v442
        %v444 = vpop.f32.mrf.mxu0
        %v445 = vadd.f32 0.0, %v444
        %v446 = vpop.f32.mrf.mxu0
        %v447 = vadd.f32 0.0, %v446
        %v448 = vpop.f32.mrf.mxu0
        %v449 = vadd.f32 0.0, %v448
        %450 = vdwg.mxu0
        %v452 = vunpack.c.l.b16 %v240
        %v453 = vpack.c.b16 %v279, %v452
        %v454 = vpack.c.b16 %v281, %v280
        %v455 = vpack.c.b16 %v283, %v282
        %v456 = vpack.c.b16 %v285, %v284
        %v457 = vpack.c.b16 %v287, %v286
        %v458 = vpack.c.b16 %v289, %v288
        %v459 = vpack.c.b16 %v291, %v290
        %v460 = vpack.c.b16 %v293, %v292
        %v463 = vunpack.c.l.b16 %v258
        %v464 = vunpack.c.h.b16 %v258
        %v465 = vunpack.c.l.b16 %v259
        %v466 = vunpack.c.h.b16 %v259
        %v467 = vpack.c.b16 %v465, %v463
        %v468 = vpack.c.b16 %v466, %v464
        %v472 = vsel %vm313, %v453, 0
        %v475 = vsel %vm313, %v454, 0
        %v478 = vsel %vm313, %v455, 0
        %v481 = vsel %vm313, %v456, 0
        %v484 = vsel %vm313, %v457, 0
        %v487 = vsel %vm313, %v458, 0
        %v490 = vsel %vm313, %v459, 0
        %v493 = vsel %vm313, %v460, 0
        %495 = vmatprep.subr.bf16.mxu0 0
        %496 = vmatpush1.bf16.msra.mxu0 0
        %497 = vmatprep.subr.bf16.mxu0 0
        %498 = vmatpush1.bf16.msra.mxu0 0
        %499 = vmatprep.subr.bf16.mxu0 0
        %500 = vmatpush1.bf16.msra.mxu0 0
        %501 = vmatprep.subr.bf16.mxu0 0
        %502 = vmatpush1.bf16.msra.mxu0 0
        %503 = vmatprep.subr.bf16.mxu0 0
        %504 = vmatpush1.bf16.msra.mxu0 0
        %505 = vmatprep.subr.bf16.mxu0 0
        %506 = vmatpush1.bf16.msra.mxu0 0
        %507 = vmatprep.subr.bf16.mxu0 0
        %508 = vmatpush1.bf16.msra.mxu0 0
        %509 = vmatprep.subr.bf16.mxu0 %v468
        %510 = vmatpush1.bf16.msra.mxu0 %v467
        %511 = vmatprep.subr.bf16.mxu0 0
        %512 = vmatpush2.bf16.msra.mxu0 0
        %513 = vmatprep.subr.bf16.mxu0 0
        %514 = vmatpush2.bf16.msra.mxu0 0
        %515 = vmatprep.subr.bf16.mxu0 0
        %516 = vmatpush2.bf16.msra.mxu0 0
        %517 = vmatprep.subr.bf16.mxu0 0
        %518 = vmatpush2.bf16.msra.mxu0 0
        %519 = vmatprep.subr.bf16.mxu0 0
        %520 = vmatpush2.bf16.msra.mxu0 0
        %521 = vmatprep.subr.bf16.mxu0 0
        %522 = vmatpush2.bf16.msra.mxu0 0
        %523 = vmatprep.subr.bf16.mxu0 0
        %524 = vmatpush2.bf16.msra.mxu0 0
        %525 = vmatprep.subr.bf16.mxu0 0
        %526 = vmatpush2.bf16.msra.mxu0 0
        %527 = vmatprep.mubr.bf16.mxu0 0
        %528 = vmatmul.mubr.bf16.gmra.mxu0 %v472
        %v529 = vpop.f32.mrf.mxu0
        %v530 = vadd.f32 %v373, %v529
        %v531 = vpop.f32.mrf.mxu0
        %v532 = vadd.f32 %v375, %v531
        %v533 = vpop.f32.mrf.mxu0
        %v534 = vadd.f32 %v377, %v533
        %v535 = vpop.f32.mrf.mxu0
        %v536 = vadd.f32 %v379, %v535
        %537 = vmatprep.mubr.bf16.mxu0 0
        %538 = vmatmul.mubr.bf16.gmra.mxu0 %v475
        %v539 = vpop.f32.mrf.mxu0
        %v540 = vadd.f32 %v383, %v539
        %v541 = vpop.f32.mrf.mxu0
        %v542 = vadd.f32 %v385, %v541
        %v543 = vpop.f32.mrf.mxu0
        %v544 = vadd.f32 %v387, %v543
        %v545 = vpop.f32.mrf.mxu0
        %v546 = vadd.f32 %v389, %v545
        %547 = vmatprep.mubr.bf16.mxu0 0
        %548 = vmatmul.mubr.bf16.gmra.mxu0 %v478
        %v549 = vpop.f32.mrf.mxu0
        %v550 = vadd.f32 %v393, %v549
        %v551 = vpop.f32.mrf.mxu0
        %v552 = vadd.f32 %v395, %v551
        %v553 = vpop.f32.mrf.mxu0
        %v554 = vadd.f32 %v397, %v553
        %v555 = vpop.f32.mrf.mxu0
        %v556 = vadd.f32 %v399, %v555
        %557 = vmatprep.mubr.bf16.mxu0 0
        %558 = vmatmul.mubr.bf16.gmra.mxu0 %v481
        %v559 = vpop.f32.mrf.mxu0
        %v560 = vadd.f32 %v403, %v559
        %v561 = vpop.f32.mrf.mxu0
        %v562 = vadd.f32 %v405, %v561
        %v563 = vpop.f32.mrf.mxu0
        %v564 = vadd.f32 %v407, %v563
        %v565 = vpop.f32.mrf.mxu0
        %v566 = vadd.f32 %v409, %v565
        %567 = vmatprep.mubr.bf16.mxu0 0
        %568 = vmatmul.mubr.bf16.gmra.mxu0 %v484
        %v569 = vpop.f32.mrf.mxu0
        %v570 = vadd.f32 %v413, %v569
        %v571 = vpop.f32.mrf.mxu0
        %v572 = vadd.f32 %v415, %v571
        %v573 = vpop.f32.mrf.mxu0
        %v574 = vadd.f32 %v417, %v573
        %v575 = vpop.f32.mrf.mxu0
        %v576 = vadd.f32 %v419, %v575
        %577 = vmatprep.mubr.bf16.mxu0 0
        %578 = vmatmul.mubr.bf16.gmra.mxu0 %v487
        %v579 = vpop.f32.mrf.mxu0
        %v580 = vadd.f32 %v423, %v579
        %v581 = vpop.f32.mrf.mxu0
        %v582 = vadd.f32 %v425, %v581
        %v583 = vpop.f32.mrf.mxu0
        %v584 = vadd.f32 %v427, %v583
        %v585 = vpop.f32.mrf.mxu0
        %v586 = vadd.f32 %v429, %v585
        %587 = vmatprep.mubr.bf16.mxu0 0
        %588 = vmatmul.mubr.bf16.gmra.mxu0 %v490
        %v589 = vpop.f32.mrf.mxu0
        %v590 = vadd.f32 %v433, %v589
        %v591 = vpop.f32.mrf.mxu0
        %v592 = vadd.f32 %v435, %v591
        %v593 = vpop.f32.mrf.mxu0
        %v594 = vadd.f32 %v437, %v593
        %v595 = vpop.f32.mrf.mxu0
        %v596 = vadd.f32 %v439, %v595
        %597 = vmatprep.mubr.bf16.mxu0 0
        %598 = vmatmul.mubr.bf16.gmra.mxu0 %v493
        %v599 = vpop.f32.mrf.mxu0
        %v600 = vadd.f32 %v443, %v599
        %v601 = vpop.f32.mrf.mxu0
        %v602 = vadd.f32 %v445, %v601
        %v603 = vpop.f32.mrf.mxu0
        %v604 = vadd.f32 %v447, %v603
        %v605 = vpop.f32.mrf.mxu0
        %v606 = vadd.f32 %v449, %v605
        %607 = vdwg.mxu0
        %s608 = scalar_lea.vmem %s1, 32
        %v609 = vld [vmem:[%s608] sm:$0xff]
        %v610 = vld [vmem:[%s608 + $0x8] sm:$0xff]
        %v612 = vunpack.c.l.b16 %v257
        %v613 = vpack.c.b16 %v612, %v294
        %v616 = vunpack.c.l.b16 %v609
        %v617 = vunpack.c.h.b16 %v609
        %v618 = vunpack.c.l.b16 %v610
        %v619 = vunpack.c.h.b16 %v610
        %v620 = vpack.c.b16 %v618, %v616
        %v621 = vpack.c.b16 %v619, %v617
        %v625 = vsel %vm313, %v613, 0
        %627 = vmatprep.subr.bf16.mxu0 0
        %628 = vmatpush1.bf16.msra.mxu0 0
        %629 = vmatprep.subr.bf16.mxu0 0
        %630 = vmatpush1.bf16.msra.mxu0 0
        %631 = vmatprep.subr.bf16.mxu0 0
        %632 = vmatpush1.bf16.msra.mxu0 0
        %633 = vmatprep.subr.bf16.mxu0 0
        %634 = vmatpush1.bf16.msra.mxu0 0
        %635 = vmatprep.subr.bf16.mxu0 0
        %636 = vmatpush1.bf16.msra.mxu0 0
        %637 = vmatprep.subr.bf16.mxu0 0
        %638 = vmatpush1.bf16.msra.mxu0 0
        %639 = vmatprep.subr.bf16.mxu0 0
        %640 = vmatpush1.bf16.msra.mxu0 0
        %641 = vmatprep.subr.bf16.mxu0 %v621
        %642 = vmatpush1.bf16.msra.mxu0 %v620
        %643 = vmatprep.subr.bf16.mxu0 0
        %644 = vmatpush2.bf16.msra.mxu0 0
        %645 = vmatprep.subr.bf16.mxu0 0
        %646 = vmatpush2.bf16.msra.mxu0 0
        %647 = vmatprep.subr.bf16.mxu0 0
        %648 = vmatpush2.bf16.msra.mxu0 0
        %649 = vmatprep.subr.bf16.mxu0 0
        %650 = vmatpush2.bf16.msra.mxu0 0
        %651 = vmatprep.subr.bf16.mxu0 0
        %652 = vmatpush2.bf16.msra.mxu0 0
        %653 = vmatprep.subr.bf16.mxu0 0
        %654 = vmatpush2.bf16.msra.mxu0 0
        %655 = vmatprep.subr.bf16.mxu0 0
        %656 = vmatpush2.bf16.msra.mxu0 0
        %657 = vmatprep.subr.bf16.mxu0 0
        %658 = vmatpush2.bf16.msra.mxu0 0
        %659 = vmatprep.mubr.bf16.mxu0 0
        %660 = vmatmul.mubr.bf16.gmra.mxu0 %v475
        %v661 = vpop.f32.mrf.mxu0
        %v662 = vadd.f32 0.0, %v661
        %v663 = vpop.f32.mrf.mxu0
        %v664 = vadd.f32 0.0, %v663
        %v665 = vpop.f32.mrf.mxu0
        %v666 = vadd.f32 0.0, %v665
        %v667 = vpop.f32.mrf.mxu0
        %v668 = vadd.f32 0.0, %v667
        %669 = vmatprep.mubr.bf16.mxu0 0
        %670 = vmatmul.mubr.bf16.gmra.mxu0 %v478
        %v671 = vpop.f32.mrf.mxu0
        %v672 = vadd.f32 0.0, %v671
        %v673 = vpop.f32.mrf.mxu0
        %v674 = vadd.f32 0.0, %v673
        %v675 = vpop.f32.mrf.mxu0
        %v676 = vadd.f32 0.0, %v675
        %v677 = vpop.f32.mrf.mxu0
        %v678 = vadd.f32 0.0, %v677
        %679 = vmatprep.mubr.bf16.mxu0 0
        %680 = vmatmul.mubr.bf16.gmra.mxu0 %v481
        %v681 = vpop.f32.mrf.mxu0
        %v682 = vadd.f32 0.0, %v681
        %v683 = vpop.f32.mrf.mxu0
        %v684 = vadd.f32 0.0, %v683
        %v685 = vpop.f32.mrf.mxu0
        %v686 = vadd.f32 0.0, %v685
        %v687 = vpop.f32.mrf.mxu0
        %v688 = vadd.f32 0.0, %v687
        %689 = vmatprep.mubr.bf16.mxu0 0
        %690 = vmatmul.mubr.bf16.gmra.mxu0 %v484
        %v691 = vpop.f32.mrf.mxu0
        %v692 = vadd.f32 0.0, %v691
        %v693 = vpop.f32.mrf.mxu0
        %v694 = vadd.f32 0.0, %v693
        %v695 = vpop.f32.mrf.mxu0
        %v696 = vadd.f32 0.0, %v695
        %v697 = vpop.f32.mrf.mxu0
        %v698 = vadd.f32 0.0, %v697
        %699 = vmatprep.mubr.bf16.mxu0 0
        %700 = vmatmul.mubr.bf16.gmra.mxu0 %v487
        %v701 = vpop.f32.mrf.mxu0
        %v702 = vadd.f32 0.0, %v701
        %v703 = vpop.f32.mrf.mxu0
        %v704 = vadd.f32 0.0, %v703
        %v705 = vpop.f32.mrf.mxu0
        %v706 = vadd.f32 0.0, %v705
        %v707 = vpop.f32.mrf.mxu0
        %v708 = vadd.f32 0.0, %v707
        %709 = vmatprep.mubr.bf16.mxu0 0
        %710 = vmatmul.mubr.bf16.gmra.mxu0 %v490
        %v711 = vpop.f32.mrf.mxu0
        %v712 = vadd.f32 0.0, %v711
        %v713 = vpop.f32.mrf.mxu0
        %v714 = vadd.f32 0.0, %v713
        %v715 = vpop.f32.mrf.mxu0
        %v716 = vadd.f32 0.0, %v715
        %v717 = vpop.f32.mrf.mxu0
        %v718 = vadd.f32 0.0, %v717
        %719 = vmatprep.mubr.bf16.mxu0 0
        %720 = vmatmul.mubr.bf16.gmra.mxu0 %v493
        %v721 = vpop.f32.mrf.mxu0
        %v722 = vadd.f32 0.0, %v721
        %v723 = vpop.f32.mrf.mxu0
        %v724 = vadd.f32 0.0, %v723
        %v725 = vpop.f32.mrf.mxu0
        %v726 = vadd.f32 0.0, %v725
        %v727 = vpop.f32.mrf.mxu0
        %v728 = vadd.f32 0.0, %v727
        %729 = vmatprep.mubr.bf16.mxu0 0
        %730 = vmatmul.mubr.bf16.gmra.mxu0 %v625
        %v731 = vpop.f32.mrf.mxu0
        %v732 = vadd.f32 0.0, %v731
        %v733 = vpop.f32.mrf.mxu0
        %v734 = vadd.f32 0.0, %v733
        %v735 = vpop.f32.mrf.mxu0
        %v736 = vadd.f32 0.0, %v735
        %v737 = vpop.f32.mrf.mxu0
        %v738 = vadd.f32 0.0, %v737
        %739 = vdwg.mxu0
        %v740 = vadd.f32 %v530, %v662
        %v741 = vadd.f32 %v532, %v664
        %v742 = vadd.f32 %v534, %v666
        %v743 = vadd.f32 %v536, %v668
        %v744 = vadd.f32 %v540, %v672
        %v745 = vadd.f32 %v542, %v674
        %v746 = vadd.f32 %v544, %v676
        %v747 = vadd.f32 %v546, %v678
        %v748 = vadd.f32 %v550, %v682
        %v749 = vadd.f32 %v552, %v684
        %v750 = vadd.f32 %v554, %v686
        %v751 = vadd.f32 %v556, %v688
        %v752 = vadd.f32 %v560, %v692
        %v753 = vadd.f32 %v562, %v694
        %v754 = vadd.f32 %v564, %v696
        %v755 = vadd.f32 %v566, %v698
        %v756 = vadd.f32 %v570, %v702
        %v757 = vadd.f32 %v572, %v704
        %v758 = vadd.f32 %v574, %v706
        %v759 = vadd.f32 %v576, %v708
        %v760 = vadd.f32 %v580, %v712
        %v761 = vadd.f32 %v582, %v714
        %v762 = vadd.f32 %v584, %v716
        %v763 = vadd.f32 %v586, %v718
        %v764 = vadd.f32 %v590, %v722
        %v765 = vadd.f32 %v592, %v724
        %v766 = vadd.f32 %v594, %v726
        %v767 = vadd.f32 %v596, %v728
        %v768 = vadd.f32 %v600, %v732
        %v769 = vadd.f32 %v602, %v734
        %v770 = vadd.f32 %v604, %v736
        %v771 = vadd.f32 %v606, %v738
        %v772 = vld [vmem:[%s2] sm:$0x3]
        %v774 = vlaneseq
        %v775 = vshrl.u32 %v774, 7
        %v776 = vsub.s32 0, %v775
        %v777 = vrot.slane %v772, %v776
        %v778 = vlaneseq
        %v779 = vshrl.u32 %v778, 7
        %v780 = vsub.s32 1, %v779
        %v781 = vrot.slane %v772, %v780
        %v784 = vadd.f32 %v740, %v777
        %v785 = vadd.f32 %v741, %v781
        %v786 = vadd.f32 %v742, %v777
        %v787 = vadd.f32 %v743, %v781
        %v788 = vadd.f32 %v744, %v777
        %v789 = vadd.f32 %v745, %v781
        %v790 = vadd.f32 %v746, %v777
        %v791 = vadd.f32 %v747, %v781
        %v792 = vadd.f32 %v748, %v777
        %v793 = vadd.f32 %v749, %v781
        %v794 = vadd.f32 %v750, %v777
        %v795 = vadd.f32 %v751, %v781
        %v796 = vadd.f32 %v752, %v777
        %v797 = vadd.f32 %v753, %v781
        %v798 = vadd.f32 %v754, %v777
        %v799 = vadd.f32 %v755, %v781
        %v800 = vadd.f32 %v756, %v777
        %v801 = vadd.f32 %v757, %v781
        %v802 = vadd.f32 %v758, %v777
        %v803 = vadd.f32 %v759, %v781
        %v804 = vadd.f32 %v760, %v777
        %v805 = vadd.f32 %v761, %v781
        %v806 = vadd.f32 %v762, %v777
        %v807 = vadd.f32 %v763, %v781
        %v808 = vadd.f32 %v764, %v777
        %v809 = vadd.f32 %v765, %v781
        %v810 = vadd.f32 %v766, %v777
        %v811 = vadd.f32 %v767, %v781
        %v812 = vadd.f32 %v768, %v777
        %v813 = vadd.f32 %v769, %v781
        %v814 = vadd.f32 %v770, %v777
        %v815 = vadd.f32 %v771, %v781
        %vm816 = vcmp.ge.f32.partialorder %v784, 0.0
        %vm817 = vcmp.ge.f32.partialorder %v785, 0.0
        %vm818 = vcmp.ge.f32.partialorder %v786, 0.0
        %vm819 = vcmp.ge.f32.partialorder %v787, 0.0
        %vm820 = vcmp.ge.f32.partialorder %v788, 0.0
        %vm821 = vcmp.ge.f32.partialorder %v789, 0.0
        %vm822 = vcmp.ge.f32.partialorder %v790, 0.0
        %vm823 = vcmp.ge.f32.partialorder %v791, 0.0
        %vm824 = vcmp.ge.f32.partialorder %v792, 0.0
        %vm825 = vcmp.ge.f32.partialorder %v793, 0.0
        %vm826 = vcmp.ge.f32.partialorder %v794, 0.0
        %vm827 = vcmp.ge.f32.partialorder %v795, 0.0
        %vm828 = vcmp.ge.f32.partialorder %v796, 0.0
        %vm829 = vcmp.ge.f32.partialorder %v797, 0.0
        %vm830 = vcmp.ge.f32.partialorder %v798, 0.0
        %vm831 = vcmp.ge.f32.partialorder %v799, 0.0
        %vm832 = vcmp.ge.f32.partialorder %v800, 0.0
        %vm833 = vcmp.ge.f32.partialorder %v801, 0.0
        %vm834 = vcmp.ge.f32.partialorder %v802, 0.0
        %vm835 = vcmp.ge.f32.partialorder %v803, 0.0
        %vm836 = vcmp.ge.f32.partialorder %v804, 0.0
        %vm837 = vcmp.ge.f32.partialorder %v805, 0.0
        %vm838 = vcmp.ge.f32.partialorder %v806, 0.0
        %vm839 = vcmp.ge.f32.partialorder %v807, 0.0
        %vm840 = vcmp.ge.f32.partialorder %v808, 0.0
        %vm841 = vcmp.ge.f32.partialorder %v809, 0.0
        %vm842 = vcmp.ge.f32.partialorder %v810, 0.0
        %vm843 = vcmp.ge.f32.partialorder %v811, 0.0
        %vm844 = vcmp.ge.f32.partialorder %v812, 0.0
        %vm845 = vcmp.ge.f32.partialorder %v813, 0.0
        %vm846 = vcmp.ge.f32.partialorder %v814, 0.0
        %vm847 = vcmp.ge.f32.partialorder %v815, 0.0
        %v848 = vmul.f32 %v784, 0.01
        %v849 = vmul.f32 %v785, 0.01
        %v850 = vmul.f32 %v786, 0.01
        %v851 = vmul.f32 %v787, 0.01
        %v852 = vmul.f32 %v788, 0.01
        %v853 = vmul.f32 %v789, 0.01
        %v854 = vmul.f32 %v790, 0.01
        %v855 = vmul.f32 %v791, 0.01
        %v856 = vmul.f32 %v792, 0.01
        %v857 = vmul.f32 %v793, 0.01
        %v858 = vmul.f32 %v794, 0.01
        %v859 = vmul.f32 %v795, 0.01
        %v860 = vmul.f32 %v796, 0.01
        %v861 = vmul.f32 %v797, 0.01
        %v862 = vmul.f32 %v798, 0.01
        %v863 = vmul.f32 %v799, 0.01
        %v864 = vmul.f32 %v800, 0.01
        %v865 = vmul.f32 %v801, 0.01
        %v866 = vmul.f32 %v802, 0.01
        %v867 = vmul.f32 %v803, 0.01
        %v868 = vmul.f32 %v804, 0.01
        %v869 = vmul.f32 %v805, 0.01
        %v870 = vmul.f32 %v806, 0.01
        %v871 = vmul.f32 %v807, 0.01
        %v872 = vmul.f32 %v808, 0.01
        %v873 = vmul.f32 %v809, 0.01
        %v874 = vmul.f32 %v810, 0.01
        %v875 = vmul.f32 %v811, 0.01
        %v876 = vmul.f32 %v812, 0.01
        %v877 = vmul.f32 %v813, 0.01
        %v878 = vmul.f32 %v814, 0.01
        %v879 = vmul.f32 %v815, 0.01
        %v880 = vsel %vm816, %v784, %v848
        %v881 = vsel %vm817, %v785, %v849
        %v882 = vsel %vm818, %v786, %v850
        %v883 = vsel %vm819, %v787, %v851
        %v884 = vsel %vm820, %v788, %v852
        %v885 = vsel %vm821, %v789, %v853
        %v886 = vsel %vm822, %v790, %v854
        %v887 = vsel %vm823, %v791, %v855
        %v888 = vsel %vm824, %v792, %v856
        %v889 = vsel %vm825, %v793, %v857
        %v890 = vsel %vm826, %v794, %v858
        %v891 = vsel %vm827, %v795, %v859
        %v892 = vsel %vm828, %v796, %v860
        %v893 = vsel %vm829, %v797, %v861
        %v894 = vsel %vm830, %v798, %v862
        %v895 = vsel %vm831, %v799, %v863
        %v896 = vsel %vm832, %v800, %v864
        %v897 = vsel %vm833, %v801, %v865
        %v898 = vsel %vm834, %v802, %v866
        %v899 = vsel %vm835, %v803, %v867
        %v900 = vsel %vm836, %v804, %v868
        %v901 = vsel %vm837, %v805, %v869
        %v902 = vsel %vm838, %v806, %v870
        %v903 = vsel %vm839, %v807, %v871
        %v904 = vsel %vm840, %v808, %v872
        %v905 = vsel %vm841, %v809, %v873
        %v906 = vsel %vm842, %v810, %v874
        %v907 = vsel %vm843, %v811, %v875
        %v908 = vsel %vm844, %v812, %v876
        %v909 = vsel %vm845, %v813, %v877
        %v910 = vsel %vm846, %v814, %v878
        %v911 = vsel %vm847, %v815, %v879
        %v912 = vadd.f32 %v880, %v881
        %v913 = vadd.f32 %v882, %v883
        %v914 = vadd.f32 %v884, %v885
        %v915 = vadd.f32 %v886, %v887
        %v916 = vadd.f32 %v888, %v889
        %v917 = vadd.f32 %v890, %v891
        %v918 = vadd.f32 %v892, %v893
        %v919 = vadd.f32 %v894, %v895
        %v920 = vadd.f32 %v896, %v897
        %v921 = vadd.f32 %v898, %v899
        %v922 = vadd.f32 %v900, %v901
        %v923 = vadd.f32 %v902, %v903
        %v924 = vadd.f32 %v904, %v905
        %v925 = vadd.f32 %v906, %v907
        %v926 = vadd.f32 %v908, %v909
        %v927 = vadd.f32 %v910, %v911
        %v928 = vadd.f32 %v912, %v913
        %v929 = vmul.f32 %v928, 0.25
        %v930 = vrot.slane %v929, 4
        %v931 = vadd.f32 %v929, %v930
        %v932 = vrot.slane %v931, 2
        %v933 = vadd.f32 %v931, %v932
        %v934 = vrot.slane %v933, 1
        %v935 = vadd.f32 %v933, %v934
        %v936 = vadd.f32 %v935, 0.0
        %v937 = vmul.f32 %v929, %v929
        %v938 = vrot.slane %v937, 4
        %v939 = vadd.f32 %v937, %v938
        %v940 = vrot.slane %v939, 2
        %v941 = vadd.f32 %v939, %v940
        %v942 = vrot.slane %v941, 1
        %v943 = vadd.f32 %v941, %v942
        %v944 = vadd.f32 %v943, 0.0
        %vm945 = vcmask 64512
        %946 = vst.msk [vmem:[%s221] sm:$0xff] %vm945, %v929
        %v947 = vadd.f32 %v914, %v915
        %v948 = vmul.f32 %v947, 0.25
        %v949 = vrot.slane %v948, 4
        %v950 = vadd.f32 %v948, %v949
        %v951 = vrot.slane %v950, 2
        %v952 = vadd.f32 %v950, %v951
        %v953 = vrot.slane %v952, 1
        %v954 = vadd.f32 %v952, %v953
        %v955 = vadd.f32 %v936, %v954
        %v956 = vmul.f32 %v948, %v948
        %v957 = vrot.slane %v956, 4
        %v958 = vadd.f32 %v956, %v957
        %v959 = vrot.slane %v958, 2
        %v960 = vadd.f32 %v958, %v959
        %v961 = vrot.slane %v960, 1
        %v962 = vadd.f32 %v960, %v961
        %v963 = vadd.f32 %v944, %v962
        %s964 = scalar_lea.vmem %s221, 8 [#allocation2]
        %965 = vst.msk [vmem:[%s964] sm:$0xff] %vm945, %v948
        %v966 = vadd.f32 %v916, %v917
        %v967 = vmul.f32 %v966, 0.25
        %v968 = vrot.slane %v967, 4
        %v969 = vadd.f32 %v967, %v968
        %v970 = vrot.slane %v969, 2
        %v971 = vadd.f32 %v969, %v970
        %v972 = vrot.slane %v971, 1
        %v973 = vadd.f32 %v971, %v972
        %v974 = vadd.f32 %v955, %v973
        %v975 = vmul.f32 %v967, %v967
        %v976 = vrot.slane %v975, 4
        %v977 = vadd.f32 %v975, %v976
        %v978 = vrot.slane %v977, 2
        %v979 = vadd.f32 %v977, %v978
        %v980 = vrot.slane %v979, 1
        %v981 = vadd.f32 %v979, %v980
        %v982 = vadd.f32 %v963, %v981
        %s983 = scalar_lea.vmem %s221, 16 [#allocation2]
        %984 = vst.msk [vmem:[%s983] sm:$0xff] %vm945, %v967
        %v985 = vadd.f32 %v918, %v919
        %v986 = vmul.f32 %v985, 0.25
        %v987 = vrot.slane %v986, 4
        %v988 = vadd.f32 %v986, %v987
        %v989 = vrot.slane %v988, 2
        %v990 = vadd.f32 %v988, %v989
        %v991 = vrot.slane %v990, 1
        %v992 = vadd.f32 %v990, %v991
        %v993 = vadd.f32 %v974, %v992
        %v994 = vmul.f32 %v986, %v986
        %v995 = vrot.slane %v994, 4
        %v996 = vadd.f32 %v994, %v995
        %v997 = vrot.slane %v996, 2
        %v998 = vadd.f32 %v996, %v997
        %v999 = vrot.slane %v998, 1
        %v1000 = vadd.f32 %v998, %v999
        %v1001 = vadd.f32 %v982, %v1000
        %s1002 = scalar_lea.vmem %s221, 24 [#allocation2]
        %1003 = vst.msk [vmem:[%s1002] sm:$0xff] %vm945, %v986
        %v1004 = vadd.f32 %v920, %v921
        %v1005 = vmul.f32 %v1004, 0.25
        %v1006 = vrot.slane %v1005, 4
        %v1007 = vadd.f32 %v1005, %v1006
        %v1008 = vrot.slane %v1007, 2
        %v1009 = vadd.f32 %v1007, %v1008
        %v1010 = vrot.slane %v1009, 1
        %v1011 = vadd.f32 %v1009, %v1010
        %v1012 = vadd.f32 %v993, %v1011
        %v1013 = vmul.f32 %v1005, %v1005
        %v1014 = vrot.slane %v1013, 4
        %v1015 = vadd.f32 %v1013, %v1014
        %v1016 = vrot.slane %v1015, 2
        %v1017 = vadd.f32 %v1015, %v1016
        %v1018 = vrot.slane %v1017, 1
        %v1019 = vadd.f32 %v1017, %v1018
        %v1020 = vadd.f32 %v1001, %v1019
        %s1021 = scalar_lea.vmem %s221, 32 [#allocation2]
        %1022 = vst.msk [vmem:[%s1021] sm:$0xff] %vm945, %v1005
        %v1023 = vadd.f32 %v922, %v923
        %v1024 = vmul.f32 %v1023, 0.25
        %v1025 = vrot.slane %v1024, 4
        %v1026 = vadd.f32 %v1024, %v1025
        %v1027 = vrot.slane %v1026, 2
        %v1028 = vadd.f32 %v1026, %v1027
        %v1029 = vrot.slane %v1028, 1
        %v1030 = vadd.f32 %v1028, %v1029
        %v1031 = vadd.f32 %v1012, %v1030
        %v1032 = vmul.f32 %v1024, %v1024
        %v1033 = vrot.slane %v1032, 4
        %v1034 = vadd.f32 %v1032, %v1033
        %v1035 = vrot.slane %v1034, 2
        %v1036 = vadd.f32 %v1034, %v1035
        %v1037 = vrot.slane %v1036, 1
        %v1038 = vadd.f32 %v1036, %v1037
        %v1039 = vadd.f32 %v1020, %v1038
        %s1040 = scalar_lea.vmem %s221, 40 [#allocation2]
        %1041 = vst.msk [vmem:[%s1040] sm:$0xff] %vm945, %v1024
        %v1042 = vadd.f32 %v924, %v925
        %v1043 = vmul.f32 %v1042, 0.25
        %v1044 = vrot.slane %v1043, 4
        %v1045 = vadd.f32 %v1043, %v1044
        %v1046 = vrot.slane %v1045, 2
        %v1047 = vadd.f32 %v1045, %v1046
        %v1048 = vrot.slane %v1047, 1
        %v1049 = vadd.f32 %v1047, %v1048
        %v1050 = vadd.f32 %v1031, %v1049
        %v1051 = vmul.f32 %v1043, %v1043
        %v1052 = vrot.slane %v1051, 4
        %v1053 = vadd.f32 %v1051, %v1052
        %v1054 = vrot.slane %v1053, 2
        %v1055 = vadd.f32 %v1053, %v1054
        %v1056 = vrot.slane %v1055, 1
        %v1057 = vadd.f32 %v1055, %v1056
        %v1058 = vadd.f32 %v1039, %v1057
        %s1059 = scalar_lea.vmem %s221, 48 [#allocation2]
        %1060 = vst.msk [vmem:[%s1059] sm:$0xff] %vm945, %v1043
        %v1061 = vadd.f32 %v926, %v927
        %v1062 = vmul.f32 %v1061, 0.25
        %v1063 = vrot.slane %v1062, 4
        %v1064 = vadd.f32 %v1062, %v1063
        %v1065 = vrot.slane %v1064, 2
        %v1066 = vadd.f32 %v1064, %v1065
        %v1067 = vrot.slane %v1066, 1
        %v1068 = vadd.f32 %v1066, %v1067
        %v1069 = vadd.f32 %v1050, %v1068
        %v1070 = vmul.f32 %v1062, %v1062
        %v1071 = vrot.slane %v1070, 4
        %v1072 = vadd.f32 %v1070, %v1071
        %v1073 = vrot.slane %v1072, 2
        %v1074 = vadd.f32 %v1072, %v1073
        %v1075 = vrot.slane %v1074, 1
        %v1076 = vadd.f32 %v1074, %v1075
        %v1077 = vadd.f32 %v1058, %v1076
        %s1078 = scalar_lea.vmem %s221, 56 [#allocation2]
        %1079 = vst.msk [vmem:[%s1078] sm:$0xff] %vm945, %v1062
        %1080 = vst [vmem:[%s227] sm:$0x1] %v1069
        %1081 = vst [vmem:[%s233] sm:$0x1] %v1077
        %s1082 = sand.u32 %s99, 1
        %s1083 = scalar_lea.sflag [#allocation3], %s1082
        %s1084 = sand.u32 %s99, 1
        %s1085 = smul.addr %s1084, 64
        %s1086 = scalar_lea.vmem [#allocation2], %s1085
        %s1087 = sand.u32 %s23, 1
        %s1088 = scalar_lea.sflag [#allocation5], %s1087
        %s1089 = sand.u32 %s125, 1
        %s1090 = scalar_lea.vmem [#allocation4], %s1089
        %s1091 = sand.u32 %s23, 1
        %s1092 = scalar_lea.sflag [#allocation5], %s1091
        %s1093 = sand.u32 %s151, 1
        %s1094 = scalar_lea.vmem [#allocation6], %s1093
        // Predicated region
        $region33: #{tpu_custom_call.1} parent=31 // pred_check
          %p1095 = pneg %p109
        $region34: #{tpu_custom_call.1} parent=31 // pred_check_branch
          %1097 = sbr.rel (%p1095) target = $region36
        $region35: #{tpu_custom_call.1} parent=31 // pred_region
          %s1099 = ssub.s32 1024, 1024
          %1100 = vsyncadd %s1083, %s1099
          %s1101 = smul.addr %s23, 8
          %s1102 = smul.addr %s1101, 128
          %s1103 = scalar_lea.hbm %s3, %s1102
          %s1104 = sshll.u32 %s1086, 4
          %s1105 = int_to_ptr.vmem [resolvable:$true] %s1104
          %1110 = dma.vmem_to_hbm [thread:$0]  %s1105, 1024, %s1103, %s1083, 128, 128, 8
        $region36: #{tpu_custom_call.1} parent=31 // pred_fallthru
          _
        // Predicated region
        $region37: #{tpu_custom_call.1} parent=31 // pred_check
          %p1111 = pneg %p135
        $region38: #{tpu_custom_call.1} parent=31 // pred_check_branch
          %1113 = sbr.rel (%p1111) target = $region40
        $region39: #{tpu_custom_call.1} parent=31 // pred_region
          %s1115 = ssub.s32 16, 16
          %1116 = vsyncadd %s1088, %s1115
          %s1117 = smul.addr %s23, 16
          %s1118 = scalar_lea.hbm %s4, %s1117
          %s1120 = sshll.u32 %s1090, 4
          %s1121 = int_to_ptr.vmem [resolvable:$true] %s1120
          %1123 = dma.vmem_to_hbm [thread:$0]  %s1121, 16, %s1118, %s1088
        $region40: #{tpu_custom_call.1} parent=31 // pred_fallthru
          _
        // Predicated region
        $region41: #{tpu_custom_call.1} parent=31 // pred_check
          %p1124 = pneg %p161
        $region42: #{tpu_custom_call.1} parent=31 // pred_check_branch
          %1126 = sbr.rel (%p1124) target = $region44
        $region43: #{tpu_custom_call.1} parent=31 // pred_region
          %s1128 = ssub.s32 16, 16
          %1129 = vsyncadd %s1092, %s1128
          %s1130 = smul.addr %s23, 16
          %s1131 = scalar_lea.hbm %s5, %s1130
          %s1133 = sshll.u32 %s1094, 4
          %s1134 = int_to_ptr.vmem [resolvable:$true] %s1133
          %1136 = dma.vmem_to_hbm [thread:$0]  %s1134, 16, %s1131, %s1092
        $region44: #{tpu_custom_call.1} parent=31 // pred_fallthru
          _
      $region32: #{tpu_custom_call.1} parent=5 // pred_fallthru
        _
      %p1137 = scmp.le.s32.totalorder 2, %s18
      // Predicated region
      $region45: #{tpu_custom_call.1} parent=5 // pred_check
        %p1138 = pneg %p1137
      $region46: #{tpu_custom_call.1} parent=5 // pred_check_branch
        %1140 = sbr.rel (%p1138) target = $region48
      $region47: #{tpu_custom_call.1} parent=5 // pred_region
        %s1141 = ssub.s32 %s18, 2
        // Predicated region
        $region49: #{tpu_custom_call.1} parent=47 // pred_check
          %p1142 = pneg %p115
        $region50: #{tpu_custom_call.1} parent=47 // pred_check_branch
          %1144 = sbr.rel (%p1142) target = $region52
        $region51: #{tpu_custom_call.1} parent=47 // pred_region
          %s1145 = sand.u32 %s100, 1
          %s1146 = scalar_lea.sflag [#allocation3], %s1145
          %s1147 = sand.u32 %s100, 1
          %s1148 = smul.addr %s1147, 64
          %s1149 = scalar_lea.vmem [#allocation2], %s1148
          %1150 = dma.done %s1146, 1024
        $region52: #{tpu_custom_call.1} parent=47 // pred_fallthru
          _
        // Predicated region
        $region53: #{tpu_custom_call.1} parent=47 // pred_check
          %p1151 = pneg %p141
        $region54: #{tpu_custom_call.1} parent=47 // pred_check_branch
          %1153 = sbr.rel (%p1151) target = $region56
        $region55: #{tpu_custom_call.1} parent=47 // pred_region
          %s1154 = sand.u32 %s24, 1
          %s1155 = scalar_lea.sflag [#allocation5], %s1154
          %s1156 = sand.u32 %s126, 1
          %s1157 = scalar_lea.vmem [#allocation4], %s1156
          %1158 = dma.done %s1155, 16
        $region56: #{tpu_custom_call.1} parent=47 // pred_fallthru
          _
        // Predicated region
        $region57: #{tpu_custom_call.1} parent=47 // pred_check
          %p1159 = pneg %p167
        $region58: #{tpu_custom_call.1} parent=47 // pred_check_branch
          %1161 = sbr.rel (%p1159) target = $region60
        $region59: #{tpu_custom_call.1} parent=47 // pred_region
          %s1162 = sand.u32 %s24, 1
          %s1163 = scalar_lea.sflag [#allocation5], %s1162
          %s1164 = sand.u32 %s152, 1
          %s1165 = scalar_lea.vmem [#allocation6], %s1164
          %1166 = dma.done %s1163, 16
        $region60: #{tpu_custom_call.1} parent=47 // pred_fallthru
          _
      $region48: #{tpu_custom_call.1} parent=5 // pred_fallthru
        _
    $region6: #{tpu_custom_call.1} parent=1 // loop_footer
      %s22 = sadd.s32 1, %s18
    $region7: #{tpu_custom_call.1} parent=1 // loop_footer_branch
      %17 = sbr.rel target = $region3
    $region8: #{tpu_custom_call.1} parent=1 // loop_exit
      _
    %1167 = vsyncpa [#allocation3], 1
    %s1168 = scalar_lea.sflag [#allocation3], 1
    %1169 = vsyncpa %s1168, 1
    %1170 = vsyncpa [#allocation5], 1
    %s1171 = scalar_lea.sflag [#allocation5], 1
    %1172 = vsyncpa %s1171, 1

</llo_original>
